<compile_context>
chip_gen: v6e
topology: v6e:2x2x1
jax: 0.10.0
libtpu: 0.0.40
codegen_flags: <defaults>
</compile_context>

<pallas_src>
import math
import jax
import jax.numpy as jnp
from jax.experimental import pallas as pl
from jax.experimental.pallas import tpu as pltpu

# ---- sizes ------------------------------------------------------------------
BATCH = 8
LEN_FLUX = 64
LEN_FLUX_LATENT = 8
LEN_STATE = 4            # x_state_vector features (time is concatenated -> 5)
LEN_STATE_CAT = LEN_STATE + 1
LEN_STATE_LATENT = 8
LAT_CAT = LEN_STATE_LATENT + LEN_FLUX_LATENT   # fused 16-wide latent

TB_CAP = 2048            # max batch tile (model is tiny; big tiles amortize per-step overhead)
MIN_GRID = 2             # >=2 grid steps so v7x's 2 TensorCores both get work
_ROW_ALIGN = 16          # bf16 packs 16 sublanes per vreg -> keep offsets aligned


def _round_up(x, m):
    return ((x + m - 1) // m) * m


def _cdiv(a, b):
    return (a + b - 1) // b


# ---- parameter packing layout (static, shared by host packer and kernel) -----
# 128-lane-wide bf16 slab: (name, rows, cols), each param starts at a 16-aligned row.
_W128_ENTRIES = [
    ("we1",   LEN_FLUX,   32),      # flux-encoder stand-in, layer 1
    ("we2",   32,         LAT_CAT), # flux-encoder layer 2, packed into lanes 8..15
    ("ws1_s", LEN_STATE,  16),      # NN_state layer 1, state part of the concat
    ("ws1_t", 1,          16),      # NN_state layer 1, time part of the concat
    ("ws2",   16,         LAT_CAT), # NN_state layer 2, packed into lanes 0..7
    ("w1",    LAT_CAT,    64),      # trunk layer 1 over the fused 16-wide latent
    ("w2",    64,        128),
    ("w4",    256,       128),
    ("w5",    128,        64),
    ("w6",    64,          4),
]


def _build_w128_layout():
    layout, off = {}, 0
    for name, r, c in _W128_ENTRIES:
        layout[name] = (off, r, c)
        off += _round_up(r, _ROW_ALIGN)
    return layout, _round_up(off, _ROW_ALIGN)


W128_LAYOUT, W128_ROWS = _build_w128_layout()
W256_SHAPE = (128, 256)                      # w3 alone (already lane-dense)

_BIAS_ENTRIES = [("be1", 32), ("blat", LAT_CAT), ("bs1", 16),
                 ("b1", 64), ("b2", 128), ("b3", 256),
                 ("b4", 128), ("b5", 64), ("b6", 4)]
BIAS_LAYOUT = {name: (i, c) for i, (name, c) in enumerate(_BIAS_ENTRIES)}
BIAS_ROWS = _round_up(len(_BIAS_ENTRIES), 8)
BIAS_SHAPE = (BIAS_ROWS, 256)


# ---- kernel -----------------------------------------------------------------
def mlp1_kernel(xf_ref, xs_ref, t_ref, w256_ref, w128_ref, b_ref, out_ref):
    f32 = jnp.float32
    bf16 = jnp.bfloat16

    def w(name):                       # static, zero-cost slab views
        off, r, c = W128_LAYOUT[name]
        return w128_ref[off:off + r, 0:c]

    def b(name):
        row, c = BIAS_LAYOUT[name]
        return b_ref[row:row + 1, 0:c]

    def dot(x, wm):                    # bf16 MXU path, f32 accumulation
        return jnp.dot(x.astype(bf16), wm, preferred_element_type=f32)

    def lrelu(x):                      # LeakyReLU(0.2): vmul + vmax, no cmp/select
        return jnp.maximum(x, 0.2 * x)

    # ---- NN_flux.encode (frozen / no_grad in torch; stand-in encoder) ----
    hf = lrelu(dot(xf_ref[...], w("we1")) + b("be1"))

    # ---- NN_state layer 1: torch.cat((state, time), 1) folded into split weights ----
    hs = lrelu(dot(xs_ref[...], w("ws1_s"))
               + t_ref[...] * w("ws1_t").astype(f32)
               + b("bs1"))

    # ---- fused 16-wide latent: lanes 0..7 = state_latent, lanes 8..15 = flux_latent
    #      (packed weight slabs have zero columns in the other half, so the concat
    #       is a free VPU add and the trunk entry is a single (TB,16)@(16,64) matmul)
    lat = dot(hs, w("ws2")) + dot(hf, w("we2")) + b("blat")

    # ---- NN trunk ----
    h = lrelu(dot(lat, w("w1")) + b("b1"))
    h = lrelu(dot(h, w("w2")) + b("b2"))
    h = lrelu(dot(h, w256_ref[...]) + b("b3"))        # w3: (128, 256)
    h = lrelu(dot(h, w("w4")) + b("b4"))
    h = lrelu(dot(h, w("w5")) + b("b5"))
    out = dot(h, w("w6")) + b("b6")                   # (TB, 4)

    # ---- output heads: sigmoid everywhere, column 3 -> 10 ** (13 * sigmoid) ----
    sig = jax.nn.sigmoid(out)
    t_pred = jnp.exp(jnp.float32(13.0 * math.log(10.0)) * sig)   # exp on EUP, extra lanes free
    lane = jax.lax.broadcasted_iota(jnp.int32, sig.shape, 1)
    out_ref[...] = jnp.where(lane == 3, t_pred, sig)             # in-lane select, no concat


# ---- parameter init & packing -------------------------------------------------
def init_params(key):
    """Deterministic f32 init (uniform(+-1/sqrt(fan_in)))."""
    specs = {
        "we1": ((LEN_FLUX, 32), LEN_FLUX),            "be1": ((32,), LEN_FLUX),
        "we2": ((32, LEN_FLUX_LATENT), 32),           "be2": ((LEN_FLUX_LATENT,), 32),
        "ws1": ((LEN_STATE_CAT, 16), LEN_STATE_CAT),  "bs1": ((16,), LEN_STATE_CAT),
        "ws2": ((16, LEN_STATE_LATENT), 16),          "bs2": ((LEN_STATE_LATENT,), 16),
        "w1": ((LAT_CAT, 64), LAT_CAT),               "b1": ((64,), LAT_CAT),
        "w2": ((64, 128), 64),                        "b2": ((128,), 64),
        "w3": ((128, 256), 128),                      "b3": ((256,), 128),
        "w4": ((256, 128), 256),                      "b4": ((128,), 256),
        "w5": ((128, 64), 128),                       "b5": ((64,), 128),
        "w6": ((64, 4), 64),                          "b6": ((4,), 64),
    }
    params = {}
    keys = jax.random.split(key, len(specs))
    for k_rng, (name, (shape, fan_in)) in zip(keys, specs.items()):
        bound = 1.0 / math.sqrt(max(fan_in, 1))
        params[name] = jax.random.uniform(k_rng, shape, dtype=jnp.float32,
                                          minval=-bound, maxval=bound)
    return params


def pack_params(params):
    """Pack the small tensors into 3 contiguous slabs (2x bf16 weights, 1x f32 biases)."""
    w256 = params["w3"].astype(jnp.bfloat16)                       # (128, 256)

    src = dict(params)
    src["ws1_s"] = params["ws1"][:LEN_STATE]                       # state rows first
    src["ws1_t"] = params["ws1"][LEN_STATE:]                       # time row last
    # Fused 16-wide latent: ws2 writes lanes 0..7, we2 writes lanes 8..15.
    src["ws2"] = jnp.zeros((16, LAT_CAT), jnp.float32).at[:, :LEN_STATE_LATENT].set(params["ws2"])
    src["we2"] = jnp.zeros((32, LAT_CAT), jnp.float32).at[:, LEN_STATE_LATENT:].set(params["we2"])

    w128 = jnp.zeros((W128_ROWS, 128), jnp.float32)
    for name, (off, r, c) in W128_LAYOUT.items():
        w128 = w128.at[off:off + r, :c].set(src[name])
    w128 = w128.astype(jnp.bfloat16)                               # (W128_ROWS, 128)

    biases = dict(params)
    biases["blat"] = jnp.concatenate([params["bs2"], params["be2"]])
    bias = jnp.zeros(BIAS_SHAPE, jnp.float32)
    for name, (row, c) in BIAS_LAYOUT.items():
        bias = bias.at[row, :c].set(biases[name])
    return w256, w128, bias


# ---- forward wrapper ----------------------------------------------------------
@jax.jit
def mlp1_forward(x_flux_vector, x_state_vector, time_vector, w256, w128, bias):
    B = x_flux_vector.shape[0]

    # Grid-first tiling: bounded padding (<16 rows) and >=2 steps for v7x TC parity.
    grid_n = max(MIN_GRID, _cdiv(B, TB_CAP))
    TB = _round_up(_cdiv(B, grid_n), _ROW_ALIGN)
    B_pad = TB * grid_n

    # Matmul inputs go in as bf16 (MXU consumes bf16 anyway); time stays f32 (VPU path).
    x_flux_vector = x_flux_vector.astype(jnp.bfloat16)
    x_state_vector = x_state_vector.astype(jnp.bfloat16)

    if B_pad != B:
        pad = B_pad - B
        x_flux_vector = jnp.pad(x_flux_vector, ((0, pad), (0, 0)))
        x_state_vector = jnp.pad(x_state_vector, ((0, pad), (0, 0)))
        time_vector = jnp.pad(time_vector, ((0, pad), (0, 0)))

    out = pl.pallas_call(
        mlp1_kernel,
        out_shape=jax.ShapeDtypeStruct((B_pad, 4), jnp.float32),
        grid=(grid_n,),
        in_specs=[
            pl.BlockSpec((TB, LEN_FLUX), lambda i: (i, 0)),    # activations: tiled over batch
            pl.BlockSpec((TB, LEN_STATE), lambda i: (i, 0)),
            pl.BlockSpec((TB, 1), lambda i: (i, 0)),
            pl.BlockSpec(W256_SHAPE, lambda i: (0, 0)),        # weights: DMA'd once, resident
            pl.BlockSpec((W128_ROWS, 128), lambda i: (0, 0)),
            pl.BlockSpec(BIAS_SHAPE, lambda i: (0, 0)),
        ],
        out_specs=pl.BlockSpec((TB, 4), lambda i: (i, 0)),
        compiler_params=pltpu.CompilerParams(
            dimension_semantics=("parallel",),                 # shards batch across TCs on v7x
            vmem_limit_bytes=32 * 1024 * 1024),                # clears v5e's 16 MiB default
    )(x_flux_vector, x_state_vector, time_vector, w256, w128, bias)

    out = out[:B]
    return out[:, 0], out[:, 1], out[:, 2], out[:, 3]          # (x_H_II, x_He_II, x_He_III, T)


if __name__ == "__main__":
    key = jax.random.PRNGKey(0)
    k_params, k_flux, k_state, k_time = jax.random.split(key, 4)

    params = init_params(k_params)
    w256, w128, bias = pack_params(params)

    x_flux = jax.random.normal(k_flux, (BATCH, LEN_FLUX), dtype=jnp.float32)
    x_state = jax.random.uniform(k_state, (BATCH, LEN_STATE), dtype=jnp.float32)
    t_vec = jax.random.uniform(k_time, (BATCH, 1), dtype=jnp.float32)

    outs = mlp1_forward(x_flux, x_state, t_vec, w256, w128, bias)
    outs = jax.block_until_ready(outs)

    assert all(o.shape == (BATCH,) for o in outs)
    assert all(bool(jnp.all(jnp.isfinite(o))) for o in outs)
    print("KERNEL_OK")
</pallas_src>

<mosaic_0001>
module attributes {stable_mosaic.version = 11 : i64} {
  func.func @mlp1_kernel(%arg0: i32, %arg1: memref<16x64xbf16, #tpu.memory_space<vmem>>, %arg2: memref<16x4xbf16, #tpu.memory_space<vmem>>, %arg3: memref<16x1xf32, #tpu.memory_space<vmem>>, %arg4: memref<128x256xbf16, #tpu.memory_space<vmem>>, %arg5: memref<672x128xbf16, #tpu.memory_space<vmem>>, %arg6: memref<16x256xf32, #tpu.memory_space<vmem>>, %arg7: memref<16x4xf32, #tpu.memory_space<vmem>>) attributes {dimension_semantics = [#tpu.dimension_semantics<parallel>], iteration_bounds = array<i64: 2>, scalar_prefetch = 0 : i64, scratch_operands = 0 : i64, tpu.core_type = #tpu.core_type<tc>, window_params = [{transform_indices = @transform_0, window_bounds = array<i64: 16, 64>}, {transform_indices = @transform_1, window_bounds = array<i64: 16, 4>}, {transform_indices = @transform_2, window_bounds = array<i64: 16, 1>}, {pipeline_mode = #tpu.pipeline_mode<synchronous>, transform_indices = @transform_3, window_bounds = array<i64: 128, 256>}, {pipeline_mode = #tpu.pipeline_mode<synchronous>, transform_indices = @transform_4, window_bounds = array<i64: 672, 128>}, {pipeline_mode = #tpu.pipeline_mode<synchronous>, transform_indices = @transform_5, window_bounds = array<i64: 16, 256>}, {transform_indices = @transform_6, window_bounds = array<i64: 16, 4>}]} {
    %c0 = arith.constant 0 : index
    %c0_0 = arith.constant 0 : index
    %0 = vector.load %arg1[%c0, %c0_0] : memref<16x64xbf16, #tpu.memory_space<vmem>>, vector<16x64xbf16>
    %c0_1 = arith.constant 0 : index
    %c0_2 = arith.constant 0 : index
    %1 = vector.load %arg5[%c0_1, %c0_2] : memref<672x128xbf16, #tpu.memory_space<vmem>>, vector<64x32xbf16>
    %cst = arith.constant dense<0.000000e+00> : vector<16x32xf32>
    %2 = tpu.matmul %0, %1, %cst {dimension_numbers = #tpu.dot_dimension_numbers<[1], [0], [0], [1], [0, 0, 1, 1], [], []>} : vector<16x64xbf16>, vector<64x32xbf16>, vector<16x32xf32> -> vector<16x32xf32>
    %c0_3 = arith.constant 0 : index
    %c0_4 = arith.constant 0 : index
    %3 = vector.load %arg6[%c0_3, %c0_4] : memref<16x256xf32, #tpu.memory_space<vmem>>, vector<1x32xf32>
    %4 = vector.broadcast %3 : vector<1x32xf32> to vector<16x32xf32>
    %5 = arith.addf %2, %4 : vector<16x32xf32>
    %cst_5 = arith.constant 2.000000e-01 : f32
    %6 = vector.broadcast %cst_5 : f32 to vector<16x32xf32>
    %7 = arith.mulf %6, %5 : vector<16x32xf32>
    %8 = arith.maximumf %5, %7 : vector<16x32xf32>
    %c0_6 = arith.constant 0 : index
    %c0_7 = arith.constant 0 : index
    %9 = vector.load %arg2[%c0_6, %c0_7] : memref<16x4xbf16, #tpu.memory_space<vmem>>, vector<16x4xbf16>
    %c96 = arith.constant 96 : index
    %c0_8 = arith.constant 0 : index
    %10 = vector.load %arg5[%c96, %c0_8] : memref<672x128xbf16, #tpu.memory_space<vmem>>, vector<4x16xbf16>
    %cst_9 = arith.constant dense<0.000000e+00> : vector<16x16xf32>
    %11 = tpu.matmul %9, %10, %cst_9 {dimension_numbers = #tpu.dot_dimension_numbers<[1], [0], [0], [1], [0, 0, 1, 1], [], []>} : vector<16x4xbf16>, vector<4x16xbf16>, vector<16x16xf32> -> vector<16x16xf32>
    %c0_10 = arith.constant 0 : index
    %c0_11 = arith.constant 0 : index
    %12 = vector.load %arg3[%c0_10, %c0_11] : memref<16x1xf32, #tpu.memory_space<vmem>>, vector<16x1xf32>
    %c112 = arith.constant 112 : index
    %c0_12 = arith.constant 0 : index
    %13 = vector.load %arg5[%c112, %c0_12] : memref<672x128xbf16, #tpu.memory_space<vmem>>, vector<1x16xbf16>
    %14 = arith.extf %13 : vector<1x16xbf16> to vector<1x16xf32>
    %15 = vector.broadcast %12 : vector<16x1xf32> to vector<16x16xf32>
    %16 = vector.broadcast %14 : vector<1x16xf32> to vector<16x16xf32>
    %17 = arith.mulf %15, %16 : vector<16x16xf32>
    %18 = arith.addf %11, %17 : vector<16x16xf32>
    %c2 = arith.constant 2 : index
    %c0_13 = arith.constant 0 : index
    %19 = vector.load %arg6[%c2, %c0_13] : memref<16x256xf32, #tpu.memory_space<vmem>>, vector<1x16xf32>
    %20 = vector.broadcast %19 : vector<1x16xf32> to vector<16x16xf32>
    %21 = arith.addf %18, %20 : vector<16x16xf32>
    %cst_14 = arith.constant 2.000000e-01 : f32
    %22 = vector.broadcast %cst_14 : f32 to vector<16x16xf32>
    %23 = arith.mulf %22, %21 : vector<16x16xf32>
    %24 = arith.maximumf %21, %23 : vector<16x16xf32>
    %c128 = arith.constant 128 : index
    %c0_15 = arith.constant 0 : index
    %25 = vector.load %arg5[%c128, %c0_15] : memref<672x128xbf16, #tpu.memory_space<vmem>>, vector<16x16xbf16>
    %26 = arith.truncf %24 : vector<16x16xf32> to vector<16x16xbf16>
    %cst_16 = arith.constant dense<0.000000e+00> : vector<16x16xf32>
    %27 = tpu.matmul %26, %25, %cst_16 {dimension_numbers = #tpu.dot_dimension_numbers<[1], [0], [0], [1], [0, 0, 1, 1], [], []>} : vector<16x16xbf16>, vector<16x16xbf16>, vector<16x16xf32> -> vector<16x16xf32>
    %c64 = arith.constant 64 : index
    %c0_17 = arith.constant 0 : index
    %28 = vector.load %arg5[%c64, %c0_17] : memref<672x128xbf16, #tpu.memory_space<vmem>>, vector<32x16xbf16>
    %29 = arith.truncf %8 : vector<16x32xf32> to vector<16x32xbf16>
    %cst_18 = arith.constant dense<0.000000e+00> : vector<16x16xf32>
    %30 = tpu.matmul %29, %28, %cst_18 {dimension_numbers = #tpu.dot_dimension_numbers<[1], [0], [0], [1], [0, 0, 1, 1], [], []>} : vector<16x32xbf16>, vector<32x16xbf16>, vector<16x16xf32> -> vector<16x16xf32>
    %31 = arith.addf %27, %30 : vector<16x16xf32>
    %c1 = arith.constant 1 : index
    %c0_19 = arith.constant 0 : index
    %32 = vector.load %arg6[%c1, %c0_19] : memref<16x256xf32, #tpu.memory_space<vmem>>, vector<1x16xf32>
    %33 = vector.broadcast %32 : vector<1x16xf32> to vector<16x16xf32>
    %34 = arith.addf %31, %33 : vector<16x16xf32>
    %c144 = arith.constant 144 : index
    %c0_20 = arith.constant 0 : index
    %35 = vector.load %arg5[%c144, %c0_20] : memref<672x128xbf16, #tpu.memory_space<vmem>>, vector<16x64xbf16>
    %36 = arith.truncf %34 : vector<16x16xf32> to vector<16x16xbf16>
    %cst_21 = arith.constant dense<0.000000e+00> : vector<16x64xf32>
    %37 = tpu.matmul %36, %35, %cst_21 {dimension_numbers = #tpu.dot_dimension_numbers<[1], [0], [0], [1], [0, 0, 1, 1], [], []>} : vector<16x16xbf16>, vector<16x64xbf16>, vector<16x64xf32> -> vector<16x64xf32>
    %c3 = arith.constant 3 : index
    %c0_22 = arith.constant 0 : index
    %38 = vector.load %arg6[%c3, %c0_22] : memref<16x256xf32, #tpu.memory_space<vmem>>, vector<1x64xf32>
    %39 = vector.broadcast %38 : vector<1x64xf32> to vector<16x64xf32>
    %40 = arith.addf %37, %39 : vector<16x64xf32>
    %cst_23 = arith.constant 2.000000e-01 : f32
    %41 = vector.broadcast %cst_23 : f32 to vector<16x64xf32>
    %42 = arith.mulf %41, %40 : vector<16x64xf32>
    %43 = arith.maximumf %40, %42 : vector<16x64xf32>
    %c160 = arith.constant 160 : index
    %c0_24 = arith.constant 0 : index
    %44 = vector.load %arg5[%c160, %c0_24] : memref<672x128xbf16, #tpu.memory_space<vmem>>, vector<64x128xbf16>
    %45 = arith.truncf %43 : vector<16x64xf32> to vector<16x64xbf16>
    %cst_25 = arith.constant dense<0.000000e+00> : vector<16x128xf32>
    %46 = tpu.matmul %45, %44, %cst_25 {dimension_numbers = #tpu.dot_dimension_numbers<[1], [0], [0], [1], [0, 0, 1, 1], [], []>} : vector<16x64xbf16>, vector<64x128xbf16>, vector<16x128xf32> -> vector<16x128xf32>
    %c4 = arith.constant 4 : index
    %c0_26 = arith.constant 0 : index
    %47 = vector.load %arg6[%c4, %c0_26] : memref<16x256xf32, #tpu.memory_space<vmem>>, vector<1x128xf32>
    %48 = vector.broadcast %47 : vector<1x128xf32> to vector<16x128xf32>
    %49 = arith.addf %46, %48 : vector<16x128xf32>
    %cst_27 = arith.constant 2.000000e-01 : f32
    %50 = vector.broadcast %cst_27 : f32 to vector<16x128xf32>
    %51 = arith.mulf %50, %49 : vector<16x128xf32>
    %52 = arith.maximumf %49, %51 : vector<16x128xf32>
    %c0_28 = arith.constant 0 : index
    %c0_29 = arith.constant 0 : index
    %53 = vector.load %arg4[%c0_28, %c0_29] : memref<128x256xbf16, #tpu.memory_space<vmem>>, vector<128x256xbf16>
    %54 = arith.truncf %52 : vector<16x128xf32> to vector<16x128xbf16>
    %cst_30 = arith.constant dense<0.000000e+00> : vector<16x256xf32>
    %55 = tpu.matmul %54, %53, %cst_30 {dimension_numbers = #tpu.dot_dimension_numbers<[1], [0], [0], [1], [0, 0, 1, 1], [], []>} : vector<16x128xbf16>, vector<128x256xbf16>, vector<16x256xf32> -> vector<16x256xf32>
    %c5 = arith.constant 5 : index
    %c0_31 = arith.constant 0 : index
    %56 = vector.load %arg6[%c5, %c0_31] : memref<16x256xf32, #tpu.memory_space<vmem>>, vector<1x256xf32>
    %57 = vector.broadcast %56 : vector<1x256xf32> to vector<16x256xf32>
    %58 = arith.addf %55, %57 : vector<16x256xf32>
    %cst_32 = arith.constant 2.000000e-01 : f32
    %59 = vector.broadcast %cst_32 : f32 to vector<16x256xf32>
    %60 = arith.mulf %59, %58 : vector<16x256xf32>
    %61 = arith.maximumf %58, %60 : vector<16x256xf32>
    %c224 = arith.constant 224 : index
    %c0_33 = arith.constant 0 : index
    %62 = vector.load %arg5[%c224, %c0_33] : memref<672x128xbf16, #tpu.memory_space<vmem>>, vector<256x128xbf16>
    %63 = arith.truncf %61 : vector<16x256xf32> to vector<16x256xbf16>
    %cst_34 = arith.constant dense<0.000000e+00> : vector<16x128xf32>
    %64 = tpu.matmul %63, %62, %cst_34 {dimension_numbers = #tpu.dot_dimension_numbers<[1], [0], [0], [1], [0, 0, 1, 1], [], []>} : vector<16x256xbf16>, vector<256x128xbf16>, vector<16x128xf32> -> vector<16x128xf32>
    %c6 = arith.constant 6 : index
    %c0_35 = arith.constant 0 : index
    %65 = vector.load %arg6[%c6, %c0_35] : memref<16x256xf32, #tpu.memory_space<vmem>>, vector<1x128xf32>
    %66 = vector.broadcast %65 : vector<1x128xf32> to vector<16x128xf32>
    %67 = arith.addf %64, %66 : vector<16x128xf32>
    %cst_36 = arith.constant 2.000000e-01 : f32
    %68 = vector.broadcast %cst_36 : f32 to vector<16x128xf32>
    %69 = arith.mulf %68, %67 : vector<16x128xf32>
    %70 = arith.maximumf %67, %69 : vector<16x128xf32>
    %c480 = arith.constant 480 : index
    %c0_37 = arith.constant 0 : index
    %71 = vector.load %arg5[%c480, %c0_37] : memref<672x128xbf16, #tpu.memory_space<vmem>>, vector<128x64xbf16>
    %72 = arith.truncf %70 : vector<16x128xf32> to vector<16x128xbf16>
    %cst_38 = arith.constant dense<0.000000e+00> : vector<16x64xf32>
    %73 = tpu.matmul %72, %71, %cst_38 {dimension_numbers = #tpu.dot_dimension_numbers<[1], [0], [0], [1], [0, 0, 1, 1], [], []>} : vector<16x128xbf16>, vector<128x64xbf16>, vector<16x64xf32> -> vector<16x64xf32>
    %c7 = arith.constant 7 : index
    %c0_39 = arith.constant 0 : index
    %74 = vector.load %arg6[%c7, %c0_39] : memref<16x256xf32, #tpu.memory_space<vmem>>, vector<1x64xf32>
    %75 = vector.broadcast %74 : vector<1x64xf32> to vector<16x64xf32>
    %76 = arith.addf %73, %75 : vector<16x64xf32>
    %cst_40 = arith.constant 2.000000e-01 : f32
    %77 = vector.broadcast %cst_40 : f32 to vector<16x64xf32>
    %78 = arith.mulf %77, %76 : vector<16x64xf32>
    %79 = arith.maximumf %76, %78 : vector<16x64xf32>
    %c608 = arith.constant 608 : index
    %c0_41 = arith.constant 0 : index
    %80 = vector.load %arg5[%c608, %c0_41] : memref<672x128xbf16, #tpu.memory_space<vmem>>, vector<64x4xbf16>
    %81 = arith.truncf %79 : vector<16x64xf32> to vector<16x64xbf16>
    %cst_42 = arith.constant dense<0.000000e+00> : vector<16x4xf32>
    %82 = tpu.matmul %81, %80, %cst_42 {dimension_numbers = #tpu.dot_dimension_numbers<[1], [0], [0], [1], [0, 0, 1, 1], [], []>} : vector<16x64xbf16>, vector<64x4xbf16>, vector<16x4xf32> -> vector<16x4xf32>
    %c8 = arith.constant 8 : index
    %c0_43 = arith.constant 0 : index
    %83 = vector.load %arg6[%c8, %c0_43] : memref<16x256xf32, #tpu.memory_space<vmem>>, vector<1x4xf32>
    %84 = vector.broadcast %83 : vector<1x4xf32> to vector<16x4xf32>
    %85 = arith.addf %82, %84 : vector<16x4xf32>
    %86 = arith.negf %85 : vector<16x4xf32>
    %87 = math.exp %86 : vector<16x4xf32>
    %cst_44 = arith.constant 1.000000e+00 : f32
    %88 = vector.broadcast %cst_44 : f32 to vector<16x4xf32>
    %89 = arith.addf %88, %87 : vector<16x4xf32>
    %90 = arith.divf %88, %89 : vector<16x4xf32>
    %cst_45 = arith.constant 29.9336071 : f32
    %91 = vector.broadcast %cst_45 : f32 to vector<16x4xf32>
    %92 = arith.mulf %91, %90 : vector<16x4xf32>
    %93 = math.exp %92 : vector<16x4xf32>
    %94 = tpu.iota {dimensions = array<i32: 1>} : vector<16x4xi32>
    %c3_i32 = arith.constant 3 : i32
    %95 = vector.broadcast %c3_i32 : i32 to vector<16x4xi32>
    %96 = arith.cmpi eq, %94, %95 : vector<16x4xi32>
    %97 = arith.select %96, %93, %90 : vector<16x4xi1>, vector<16x4xf32>
    %c0_46 = arith.constant 0 : index
    %c0_47 = arith.constant 0 : index
    %98 = vector.load %arg7[%c0_46, %c0_47] : memref<16x4xf32, #tpu.memory_space<vmem>>, vector<16x4xf32>
    tpu.vector_store %arg7[%c0_46, %c0_47], %97 {strides = array<i32>} : memref<16x4xf32, #tpu.memory_space<vmem>>, vector<16x4xf32>,
    return
  }
  func.func @transform_0(%arg0: i32) -> (i32, i32) {
    %c0_i32 = arith.constant 0 : i32
    %c0_i32_0 = arith.constant 0 : i32
    return %arg0, %c0_i32 : i32, i32
  }
  func.func @transform_1(%arg0: i32) -> (i32, i32) {
    %c0_i32 = arith.constant 0 : i32
    %c0_i32_0 = arith.constant 0 : i32
    return %arg0, %c0_i32 : i32, i32
  }
  func.func @transform_2(%arg0: i32) -> (i32, i32) {
    %c0_i32 = arith.constant 0 : i32
    %c0_i32_0 = arith.constant 0 : i32
    return %arg0, %c0_i32 : i32, i32
  }
  func.func @transform_3(%arg0: i32) -> (i32, i32) {
    %c0_i32 = arith.constant 0 : i32
    %c0_i32_0 = arith.constant 0 : i32
    %c0_i32_1 = arith.constant 0 : i32
    return %c0_i32, %c0_i32_0 : i32, i32
  }
  func.func @transform_4(%arg0: i32) -> (i32, i32) {
    %c0_i32 = arith.constant 0 : i32
    %c0_i32_0 = arith.constant 0 : i32
    %c0_i32_1 = arith.constant 0 : i32
    return %c0_i32, %c0_i32_0 : i32, i32
  }
  func.func @transform_5(%arg0: i32) -> (i32, i32) {
    %c0_i32 = arith.constant 0 : i32
    %c0_i32_0 = arith.constant 0 : i32
    %c0_i32_1 = arith.constant 0 : i32
    return %c0_i32, %c0_i32_0 : i32, i32
  }
  func.func @transform_6(%arg0: i32) -> (i32, i32) {
    %c0_i32 = arith.constant 0 : i32
    %c0_i32_0 = arith.constant 0 : i32
    return %arg0, %c0_i32 : i32, i32
  }
}

</mosaic_0001>

<llo_original>
// kernel: mlp1_forward.1
$region0: #{mlp1_forward.1}
  #allocation0 [shape = 'u32[]', space=smem, size = 0x4, offset = 0x4, fixed_abs, tag = 'smem constant byte address 0x4 - core index']
  #allocation1 [shape = 'u32[144,128]{1,0:T(1,128)}', space=vmem, size = 0x12000, scoped, tag = 'internal scratch']
  %s0 = inlined_call_operand.vmem [shape: bf16[32,64], index: 0, kind: input, shape index: {}]
  %s1 = inlined_call_operand.vmem [shape: bf16[32,4], index: 1, kind: input, shape index: {}]
  %s2 = inlined_call_operand.vmem [shape: f32[32,1], index: 2, kind: input, shape index: {}]
  %s3 = inlined_call_operand.hbm [shape: bf16[128,256], index: 3, kind: input, shape index: {}]
  %s4 = inlined_call_operand.hbm [shape: bf16[672,128], index: 4, kind: input, shape index: {}]
  %s5 = inlined_call_operand.vmem [shape: f32[16,256], index: 5, kind: input, shape index: {}]
  %s6 = inlined_call_operand.vmem [shape: f32[32,4], index: 6, kind: output, shape index: {}]
  %s7 = sld [smem:[#allocation0]]
  $region65: #{mlp1_forward.1} parent=0
    _
  %s9 = ssub.s32 1, %s7
  %s10 = scalar_select 0, %s9, %s7
  $region1: #{mlp1_forward.1} parent=0
    #allocation2 [shape = 'u8[65536]{0}', space=vmem, size = 0x10000, scoped, tag = 'input window, operand 3, single buffered']
    #allocation3 [shape = 's32[2]{0}', space=sflag, size = 0x8, scoped, tag = 'scoped memory for mlp1_forward.1']
    #allocation4 [shape = 'u8[172032]{0}', space=vmem, size = 0x2a000, scoped, tag = 'input window, operand 4, single buffered']
    #allocation5 [shape = 's32[1]{0}', space=sflag, size = 0x4, scoped, tag = 'scoped memory for mlp1_forward.1']
    %11 = vsyncpa [#allocation3], 0
    %12 = vsyncpa [#allocation5], 0
    loop: start=0, step=1, limit=4
    $region2: #{mlp1_forward.1} parent=1 // loop_pre_header
      _
    $region3: #{mlp1_forward.1} parent=1 // loop_header
      %s14 = sphi 0, %s18
      %p15 = scmp.ge.s32.totalorder %s14, 4
      %s24 = sphi 0, %s26
      %s27 = sphi 0, %s24
      %s28 = sphi 0, %s27
      %s44 = sphi 0, %s28
      %s50 = sphi 0, %s52
      %s53 = sphi 0, %s50
      %s54 = sphi 0, %s53
      %s70 = sphi 0, %s54
      %s76 = sphi 0, %s78
      %s79 = sphi 0, %s76
      %s80 = sphi 0, %s79
      %s96 = sphi 0, %s80
      %s100 = sphi 0, %s100
      %s102 = sphi 0, %s100
      %s103 = sphi 0, %s102
      %s117 = sphi 0, %s103
      %s121 = sphi 0, %s121
      %s123 = sphi 0, %s121
      %s124 = sphi 0, %s123
      %s138 = sphi 0, %s124
      %s142 = sphi 0, %s142
      %s144 = sphi 0, %s142
      %s145 = sphi 0, %s144
      %s159 = sphi 0, %s145
      %s165 = sphi 0, %s167
      %s168 = sphi 0, %s165
      %s169 = sphi 0, %s168
      %s185 = sphi 0, %s169
    $region4: #{mlp1_forward.1} parent=1 // loop_header_branch
      %17 = sbr.rel (%p15) target = $region8
    $region5: #{mlp1_forward.1} parent=1 // loop_body
      %s19 = ssub.s32 %s14, 1
      %s20 = ssub.s32 %s14, 2
      %s21 = sadd.s32 %s14, 1
      %s22 = ssub.s32 %s14, %s21
      %p23 = scmp.eq.s32.totalorder %s22, 0
      %s25 = sadd.s32 %s24, 1
      %s26 = scalar_select %p23, %s24, %s25
      %p29 = pneg %p23
      %p30 = scmp.eq.s32.totalorder %s14, 1
      %p31 = por %p29, %p30
      %p32 = scmp.ne.s32.totalorder %s24, %s27
      %p33 = scmp.eq.s32.totalorder %s14, 0
      %p34 = por %p32, %p33
      %p35 = scmp.ne.s32.totalorder %s24, %s27
      %p36 = scmp.eq.s32.totalorder %s19, 1
      %p37 = por %p35, %p36
      %p38 = scmp.ne.s32.totalorder %s27, %s28
      %p39 = scmp.eq.s32.totalorder %s19, 0
      %p40 = por %p38, %p39
      %p41 = scmp.ne.s32.totalorder %s27, %s28
      %p42 = scmp.eq.s32.totalorder %s20, 1
      %p43 = por %p41, %p42
      %p45 = scmp.ne.s32.totalorder %s28, %s44
      %p46 = scmp.eq.s32.totalorder %s20, 0
      %p47 = por %p45, %p46
      %s48 = ssub.s32 %s14, %s21
      %p49 = scmp.eq.s32.totalorder %s48, 0
      %s51 = sadd.s32 %s50, 1
      %s52 = scalar_select %p49, %s50, %s51
      %p55 = pneg %p49
      %p56 = scmp.eq.s32.totalorder %s14, 1
      %p57 = por %p55, %p56
      %p58 = scmp.ne.s32.totalorder %s50, %s53
      %p59 = scmp.eq.s32.totalorder %s14, 0
      %p60 = por %p58, %p59
      %p61 = scmp.ne.s32.totalorder %s50, %s53
      %p62 = scmp.eq.s32.totalorder %s19, 1
      %p63 = por %p61, %p62
      %p64 = scmp.ne.s32.totalorder %s53, %s54
      %p65 = scmp.eq.s32.totalorder %s19, 0
      %p66 = por %p64, %p65
      %p67 = scmp.ne.s32.totalorder %s53, %s54
      %p68 = scmp.eq.s32.totalorder %s20, 1
      %p69 = por %p67, %p68
      %p71 = scmp.ne.s32.totalorder %s54, %s70
      %p72 = scmp.eq.s32.totalorder %s20, 0
      %p73 = por %p71, %p72
      %s74 = ssub.s32 %s14, %s21
      %p75 = scmp.eq.s32.totalorder %s74, 0
      %s77 = sadd.s32 %s76, 1
      %s78 = scalar_select %p75, %s76, %s77
      %p81 = pneg %p75
      %p82 = scmp.eq.s32.totalorder %s14, 1
      %p83 = por %p81, %p82
      %p84 = scmp.ne.s32.totalorder %s76, %s79
      %p85 = scmp.eq.s32.totalorder %s14, 0
      %p86 = por %p84, %p85
      %p87 = scmp.ne.s32.totalorder %s76, %s79
      %p88 = scmp.eq.s32.totalorder %s19, 1
      %p89 = por %p87, %p88
      %p90 = scmp.ne.s32.totalorder %s79, %s80
      %p91 = scmp.eq.s32.totalorder %s19, 0
      %p92 = por %p90, %p91
      %p93 = scmp.ne.s32.totalorder %s79, %s80
      %p94 = scmp.eq.s32.totalorder %s20, 1
      %p95 = por %p93, %p94
      %p97 = scmp.ne.s32.totalorder %s80, %s96
      %p98 = scmp.eq.s32.totalorder %s20, 0
      %p99 = por %p97, %p98
      %s101 = sadd.s32 %s100, 1
      %p104 = scmp.eq.s32.totalorder %s14, 1
      %p105 = scmp.ne.s32.totalorder %s100, %s102
      %p106 = scmp.eq.s32.totalorder %s14, 0
      %p107 = por %p105, %p106
      %p108 = scmp.ne.s32.totalorder %s100, %s102
      %p109 = scmp.eq.s32.totalorder %s19, 1
      %p110 = por %p108, %p109
      %p111 = scmp.ne.s32.totalorder %s102, %s103
      %p112 = scmp.eq.s32.totalorder %s19, 0
      %p113 = por %p111, %p112
      %p114 = scmp.ne.s32.totalorder %s102, %s103
      %p115 = scmp.eq.s32.totalorder %s20, 1
      %p116 = por %p114, %p115
      %p118 = scmp.ne.s32.totalorder %s103, %s117
      %p119 = scmp.eq.s32.totalorder %s20, 0
      %p120 = por %p118, %p119
      %s122 = sadd.s32 %s121, 1
      %p125 = scmp.eq.s32.totalorder %s14, 1
      %p126 = scmp.ne.s32.totalorder %s121, %s123
      %p127 = scmp.eq.s32.totalorder %s14, 0
      %p128 = por %p126, %p127
      %p129 = scmp.ne.s32.totalorder %s121, %s123
      %p130 = scmp.eq.s32.totalorder %s19, 1
      %p131 = por %p129, %p130
      %p132 = scmp.ne.s32.totalorder %s123, %s124
      %p133 = scmp.eq.s32.totalorder %s19, 0
      %p134 = por %p132, %p133
      %p135 = scmp.ne.s32.totalorder %s123, %s124
      %p136 = scmp.eq.s32.totalorder %s20, 1
      %p137 = por %p135, %p136
      %p139 = scmp.ne.s32.totalorder %s124, %s138
      %p140 = scmp.eq.s32.totalorder %s20, 0
      %p141 = por %p139, %p140
      %s143 = sadd.s32 %s142, 1
      %p146 = scmp.eq.s32.totalorder %s14, 1
      %p147 = scmp.ne.s32.totalorder %s142, %s144
      %p148 = scmp.eq.s32.totalorder %s14, 0
      %p149 = por %p147, %p148
      %p150 = scmp.ne.s32.totalorder %s142, %s144
      %p151 = scmp.eq.s32.totalorder %s19, 1
      %p152 = por %p150, %p151
      %p153 = scmp.ne.s32.totalorder %s144, %s145
      %p154 = scmp.eq.s32.totalorder %s19, 0
      %p155 = por %p153, %p154
      %p156 = scmp.ne.s32.totalorder %s144, %s145
      %p157 = scmp.eq.s32.totalorder %s20, 1
      %p158 = por %p156, %p157
      %p160 = scmp.ne.s32.totalorder %s145, %s159
      %p161 = scmp.eq.s32.totalorder %s20, 0
      %p162 = por %p160, %p161
      %s163 = ssub.s32 %s14, %s21
      %p164 = scmp.eq.s32.totalorder %s163, 0
      %s166 = sadd.s32 %s165, 1
      %s167 = scalar_select %p164, %s165, %s166
      %p170 = pneg %p164
      %p171 = scmp.eq.s32.totalorder %s14, 1
      %p172 = por %p170, %p171
      %p173 = scmp.ne.s32.totalorder %s165, %s168
      %p174 = scmp.eq.s32.totalorder %s14, 0
      %p175 = por %p173, %p174
      %p176 = scmp.ne.s32.totalorder %s165, %s168
      %p177 = scmp.eq.s32.totalorder %s19, 1
      %p178 = por %p176, %p177
      %p179 = scmp.ne.s32.totalorder %s168, %s169
      %p180 = scmp.eq.s32.totalorder %s19, 0
      %p181 = por %p179, %p180
      %p182 = scmp.ne.s32.totalorder %s168, %s169
      %p183 = scmp.eq.s32.totalorder %s20, 1
      %p184 = por %p182, %p183
      %p186 = scmp.ne.s32.totalorder %s169, %s185
      %p187 = scmp.eq.s32.totalorder %s20, 0
      %p188 = por %p186, %p187
      %p189 = scmp.le.s32.totalorder 1, %s14
      %p190 = scmp.lt.s32.totalorder %s14, 3
      %p191 = pnand %p189, %p190
      %p192 = pneg %p191
      // Predicated region
      $region9: #{mlp1_forward.1} parent=5 // pred_check
        _
      $region10: #{mlp1_forward.1} parent=5 // pred_check_branch
        %194 = sbr.rel (%p191) target = $region12
      $region11: #{mlp1_forward.1} parent=5 // pred_region
        %s195 = ssub.s32 %s14, 1
        // Predicated region
        $region13: #{mlp1_forward.1} parent=11 // pred_check
          %p196 = pneg %p113
        $region14: #{mlp1_forward.1} parent=11 // pred_check_branch
          %198 = sbr.rel (%p196) target = $region16
        $region15: #{mlp1_forward.1} parent=11 // pred_region
          %s200 = ssub.s32 2048, 2048
          %201 = vsyncadd [#allocation3], %s200
          %s202 = sshll.u32 [#allocation2], 4
          %s203 = int_to_ptr.vmem [resolvable:$true] %s202
          %208 = dma.hbm_to_vmem [thread:$0]  %s3, 2048, %s203, [#allocation3], 128, 128, 8
        $region16: #{mlp1_forward.1} parent=11 // pred_fallthru
          _
        // Predicated region
        $region17: #{mlp1_forward.1} parent=11 // pred_check
          %p209 = pneg %p134
        $region18: #{mlp1_forward.1} parent=11 // pred_check_branch
          %211 = sbr.rel (%p209) target = $region20
        $region19: #{mlp1_forward.1} parent=11 // pred_region
          %s213 = ssub.s32 5376, 5376
          %214 = vsyncadd [#allocation5], %s213
          %s215 = sshll.u32 [#allocation4], 4
          %s216 = int_to_ptr.vmem [resolvable:$true] %s215
          %221 = dma.hbm_to_vmem [thread:$0]  %s4, 5376, %s216, [#allocation5], 64, 64, 4
        $region20: #{mlp1_forward.1} parent=11 // pred_fallthru
          _
        // Predicated region
        $region21: #{mlp1_forward.1} parent=11 // pred_check
          %p222 = pneg %p155
        $region22: #{mlp1_forward.1} parent=11 // pred_check_branch
          %224 = sbr.rel (%p222) target = $region24
        $region23: #{mlp1_forward.1} parent=11 // pred_region
          _
        $region24: #{mlp1_forward.1} parent=11 // pred_fallthru
          _
      $region12: #{mlp1_forward.1} parent=5 // pred_fallthru
        _
      %p225 = scmp.lt.s32.totalorder %s14, 2
      // Predicated region
      $region25: #{mlp1_forward.1} parent=5 // pred_check
        %p226 = pneg %p225
      $region26: #{mlp1_forward.1} parent=5 // pred_check_branch
        %228 = sbr.rel (%p226) target = $region28
      $region27: #{mlp1_forward.1} parent=5 // pred_region
        // Predicated region
        $region29: #{mlp1_forward.1} parent=27 // pred_check
          %p229 = pneg %p34
        $region30: #{mlp1_forward.1} parent=27 // pred_check_branch
          %231 = sbr.rel (%p229) target = $region32
        $region31: #{mlp1_forward.1} parent=27 // pred_region
          %s232 = smul.u32 2, %s14
          %p233 = scmp.lt.s32.totalorder %s232, 3
          %s234 = scalar_select %p233, %s232, 3
          %s235 = smul.addr %s234, 4
          %s236 = scalar_lea.vmem %s0, %s235
          %s237 = smul.u32 2, %s14
        $region32: #{mlp1_forward.1} parent=27 // pred_fallthru
          _
        // Predicated region
        $region33: #{mlp1_forward.1} parent=27 // pred_check
          %p238 = pneg %p60
        $region34: #{mlp1_forward.1} parent=27 // pred_check_branch
          %240 = sbr.rel (%p238) target = $region36
        $region35: #{mlp1_forward.1} parent=27 // pred_region
          %s241 = smul.u32 2, %s14
          %p242 = scmp.lt.s32.totalorder %s241, 3
          %s243 = scalar_select %p242, %s241, 3
          %s244 = smul.addr %s243, 4
          %s245 = scalar_lea.vmem %s1, %s244
          %s246 = smul.u32 2, %s14
        $region36: #{mlp1_forward.1} parent=27 // pred_fallthru
          _
        // Predicated region
        $region37: #{mlp1_forward.1} parent=27 // pred_check
          %p247 = pneg %p86
        $region38: #{mlp1_forward.1} parent=27 // pred_check_branch
          %249 = sbr.rel (%p247) target = $region40
        $region39: #{mlp1_forward.1} parent=27 // pred_region
          %s250 = smul.u32 2, %s14
          %p251 = scmp.lt.s32.totalorder %s250, 3
          %s252 = scalar_select %p251, %s250, 3
          %s253 = smul.addr %s252, 8
          %s254 = scalar_lea.vmem %s2, %s253
          %s255 = smul.u32 2, %s14
        $region40: #{mlp1_forward.1} parent=27 // pred_fallthru
          _
      $region28: #{mlp1_forward.1} parent=5 // pred_fallthru
        _
      %p256 = scmp.le.s32.totalorder 1, %s14
      %p257 = scmp.lt.s32.totalorder %s14, 3
      %p258 = pnand %p256, %p257
      %p259 = pneg %p258
      // Predicated region
      $region41: #{mlp1_forward.1} parent=5 // pred_check
        _
      $region42: #{mlp1_forward.1} parent=5 // pred_check_branch
        %261 = sbr.rel (%p258) target = $region44
      $region43: #{mlp1_forward.1} parent=5 // pred_region
        %s262 = ssub.s32 %s14, 1
        // Predicated region
        $region45: #{mlp1_forward.1} parent=43 // pred_check
          %p263 = pneg %p113
        $region46: #{mlp1_forward.1} parent=43 // pred_check_branch
          %265 = sbr.rel (%p263) target = $region48
        $region47: #{mlp1_forward.1} parent=43 // pred_region
          %266 = dma.done [#allocation3], 2048
        $region48: #{mlp1_forward.1} parent=43 // pred_fallthru
          _
        // Predicated region
        $region49: #{mlp1_forward.1} parent=43 // pred_check
          %p267 = pneg %p134
        $region50: #{mlp1_forward.1} parent=43 // pred_check_branch
          %269 = sbr.rel (%p267) target = $region52
        $region51: #{mlp1_forward.1} parent=43 // pred_region
          %270 = dma.done [#allocation5], 5376
        $region52: #{mlp1_forward.1} parent=43 // pred_fallthru
          _
        %s271 = smul.u32 2, %s19
        %p272 = scmp.lt.s32.totalorder %s271, 3
        %s273 = scalar_select %p272, %s271, 3
        %s274 = smul.addr %s273, 4
        %s275 = scalar_lea.vmem %s0, %s274
        %p276 = pneg %p40
        %p277 = pneg %p37
        %s278 = smul.u32 2, %s19
        %p279 = scmp.lt.s32.totalorder %s278, 3
        %s280 = scalar_select %p279, %s278, 3
        %s281 = smul.addr %s280, 4
        %s282 = scalar_lea.vmem %s1, %s281
        %p283 = pneg %p66
        %p284 = pneg %p63
        %s285 = smul.u32 2, %s19
        %p286 = scmp.lt.s32.totalorder %s285, 3
        %s287 = scalar_select %p286, %s285, 3
        %s288 = smul.addr %s287, 8
        %s289 = scalar_lea.vmem %s2, %s288
        %p290 = pneg %p92
        %p291 = pneg %p89
        %p292 = pneg %p113
        %p293 = pneg %p110
        %p294 = pneg %p134
        %p295 = pneg %p131
        %p296 = pneg %p155
        %p297 = pneg %p152
        %p298 = pneg %p181
        %p299 = pneg %p178
        %s300 = smul.u32 2, %s19
        %p301 = scmp.lt.s32.totalorder %s300, 3
        %s302 = scalar_select %p301, %s300, 3
        %s303 = smul.addr %s302, 8
        %s304 = scalar_lea.vmem %s6, %s303
        %s305 = smul.u32 2, %s19
        %p306 = scmp.lt.s32.totalorder %s305, 3
        %s307 = scalar_select %p306, %s305, 3
        %s308 = smul.addr %s307, 4
        %s309 = scalar_lea.vmem %s0, %s308
        %s310 = smul.u32 2, %s19
        %s311 = smul.u32 2, %s19
        %p312 = scmp.lt.s32.totalorder %s311, 3
        %s313 = scalar_select %p312, %s311, 3
        %s314 = smul.addr %s313, 4
        %s315 = scalar_lea.vmem %s1, %s314
        %s316 = smul.u32 2, %s19
        %s317 = smul.u32 2, %s19
        %p318 = scmp.lt.s32.totalorder %s317, 3
        %s319 = scalar_select %p318, %s317, 3
        %s320 = smul.addr %s319, 8
        %s321 = scalar_lea.vmem %s2, %s320
        %s322 = smul.u32 2, %s19
        %s323 = smul.u32 2, %s19
        %p324 = scmp.lt.s32.totalorder %s323, 3
        %s325 = scalar_select %p324, %s323, 3
        %s326 = smul.addr %s325, 8
        %s327 = scalar_lea.vmem %s6, %s326
        %s328 = smul.u32 2, %s19
        %v330 = vld [vmem:[%s309] sm:$0xf]
        %v331 = vld [vmem:[%s309 + $0x4] sm:$0xf]
        %v332 = vld [vmem:[#allocation4] sm:$0xf]
        %v333 = vld [vmem:[#allocation4 + $0x4] sm:$0xf]
        %v334 = vld [vmem:[#allocation4 + $0x8] sm:$0xf]
        %v335 = vld [vmem:[#allocation4 + $0xc] sm:$0xf]
        %v336 = vld [vmem:[#allocation4 + $0x10] sm:$0xf]
        %v337 = vld [vmem:[#allocation4 + $0x14] sm:$0xf]
        %v338 = vld [vmem:[#allocation4 + $0x18] sm:$0xf]
        %v339 = vld [vmem:[#allocation4 + $0x1c] sm:$0xf]
        %v340 = vld [vmem:[%s5] ss:$0 sm:$0xff]
        %v343 = vunpack.c.l.b16 %v330
        %v344 = vunpack.c.l.b16 %v331
        %v345 = vpack.c.b16 %v344, %v343
        %v354 = vunpack.c.l.b16 %v332
        %v355 = vunpack.c.l.b16 %v333
        %v356 = vunpack.c.l.b16 %v334
        %v357 = vunpack.c.l.b16 %v335
        %v358 = vunpack.c.l.b16 %v336
        %v359 = vunpack.c.l.b16 %v337
        %v360 = vunpack.c.l.b16 %v338
        %v361 = vunpack.c.l.b16 %v339
        %v362 = vpack.c.b16 %v355, %v354
        %v363 = vpack.c.b16 %v357, %v356
        %v364 = vpack.c.b16 %v359, %v358
        %v365 = vpack.c.b16 %v361, %v360
        %vm370 = vcmask 523264
        %v372 = vsel %vm370, %v345, 0
        %374 = vmatprep.subr.bf16.mxu0 0
        %375 = vmatpush1.bf16.msra.mxu0 0
        %376 = vmatprep.subr.bf16.mxu0 0
        %377 = vmatpush1.bf16.msra.mxu0 0
        %378 = vmatprep.subr.bf16.mxu0 0
        %379 = vmatpush1.bf16.msra.mxu0 0
        %380 = vmatprep.subr.bf16.mxu0 0
        %381 = vmatpush1.bf16.msra.mxu0 0
        %382 = vmatprep.subr.bf16.mxu0 0
        %383 = vmatpush1.bf16.msra.mxu0 %v365
        %384 = vmatprep.subr.bf16.mxu0 0
        %385 = vmatpush1.bf16.msra.mxu0 %v364
        %386 = vmatprep.subr.bf16.mxu0 0
        %387 = vmatpush1.bf16.msra.mxu0 %v363
        %388 = vmatprep.subr.bf16.mxu0 0
        %389 = vmatpush1.bf16.msra.mxu0 %v362
        %390 = vmatprep.subr.bf16.mxu0 0
        %391 = vmatpush2.bf16.msra.mxu0 0
        %392 = vmatprep.subr.bf16.mxu0 0
        %393 = vmatpush2.bf16.msra.mxu0 0
        %394 = vmatprep.subr.bf16.mxu0 0
        %395 = vmatpush2.bf16.msra.mxu0 0
        %396 = vmatprep.subr.bf16.mxu0 0
        %397 = vmatpush2.bf16.msra.mxu0 0
        %398 = vmatprep.subr.bf16.mxu0 0
        %399 = vmatpush2.bf16.msra.mxu0 0
        %400 = vmatprep.subr.bf16.mxu0 0
        %401 = vmatpush2.bf16.msra.mxu0 0
        %402 = vmatprep.subr.bf16.mxu0 0
        %403 = vmatpush2.bf16.msra.mxu0 0
        %404 = vmatprep.subr.bf16.mxu0 0
        %405 = vmatpush2.bf16.msra.mxu0 0
        %406 = vmatprep.mubr.bf16.mxu0 0
        %407 = vmatmul.mubr.bf16.gmra.mxu0 %v372
        %v408 = vpop.f32.mrf.mxu0
        %v409 = vadd.f32 %v340, %v408
        %v410 = vpop.f32.mrf.mxu0
        %v411 = vpop.f32.mrf.mxu0
        %v412 = vadd.f32 %v340, %v411
        %v413 = vpop.f32.mrf.mxu0
        %414 = vdwg.mxu0
        %v415 = vmul.f32 %v409, 0.2
        %v416 = vmul.f32 %v412, 0.2
        %v417 = vmax.f32 %v409, %v415
        %v418 = vmax.f32 %v412, %v416
        %v419 = vld [vmem:[%s315] sm:$0xf]
        %v420 = vld [vmem:[%s315 + $0x4] sm:$0xf]
        %v421 = vld [vmem:[#allocation4 + $0x30] sm:$0x3]
        %v422 = vld [vmem:[%s321] sm:$0xff]
        %v423 = vld [vmem:[%s321 + $0x8] sm:$0xff]
        %v424 = vld [vmem:[#allocation4 + $0x38] sm:$0x1]
        %v425 = vunpack.c.l.bf16 %v424
        %427 = vset.pattern.permute.xlu0 0
        %428 = vperm.xlu0 %427, %v422
        %v429 = vpop.permute.xlu0 %428
        %432 = vset.pattern.permute.xlu0 0
        %433 = vperm.xlu0 %432, %v423
        %v434 = vpop.permute.xlu0 %433
        %v436 = vlaneseq
        %v437 = vshrl.u32 %v436, 7
        %v438 = vsub.s32 0, %v437
        %v439 = vrot.slane %v425, %v438
        %v440 = vmul.f32 %v429, %v439
        %v441 = vmul.f32 %v434, %v439
        %v444 = vunpack.c.l.b16 %v419
        %v445 = vunpack.c.l.b16 %v420
        %v446 = vpack.c.b16 %v445, %v444
        %vm447 = vcmask 31744
        %v449 = vsel %vm447, %v446, 0
        %vm451 = vcmask 1041408
        %v453 = vsel %vm451, %v421, 0
        %455 = vmatprep.subr.bf16.mxu0 0
        %456 = vmatpush1.bf16.msra.mxu0 0
        %457 = vmatprep.subr.bf16.mxu0 0
        %458 = vmatpush1.bf16.msra.mxu0 0
        %459 = vmatprep.subr.bf16.mxu0 0
        %460 = vmatpush1.bf16.msra.mxu0 0
        %461 = vmatprep.subr.bf16.mxu0 0
        %462 = vmatpush1.bf16.msra.mxu0 0
        %463 = vmatprep.subr.bf16.mxu0 0
        %464 = vmatpush1.bf16.msra.mxu0 0
        %465 = vmatprep.subr.bf16.mxu0 0
        %466 = vmatpush1.bf16.msra.mxu0 0
        %467 = vmatprep.subr.bf16.mxu0 0
        %468 = vmatpush1.bf16.msra.mxu0 0
        %469 = vmatprep.subr.bf16.mxu0 0
        %470 = vmatpush1.bf16.msra.mxu0 %v453
        %471 = vmatprep.subr.bf16.mxu0 0
        %472 = vmatpush2.bf16.msra.mxu0 0
        %473 = vmatprep.subr.bf16.mxu0 0
        %474 = vmatpush2.bf16.msra.mxu0 0
        %475 = vmatprep.subr.bf16.mxu0 0
        %476 = vmatpush2.bf16.msra.mxu0 0
        %477 = vmatprep.subr.bf16.mxu0 0
        %478 = vmatpush2.bf16.msra.mxu0 0
        %479 = vmatprep.subr.bf16.mxu0 0
        %480 = vmatpush2.bf16.msra.mxu0 0
        %481 = vmatprep.subr.bf16.mxu0 0
        %482 = vmatpush2.bf16.msra.mxu0 0
        %483 = vmatprep.subr.bf16.mxu0 0
        %484 = vmatpush2.bf16.msra.mxu0 0
        %485 = vmatprep.subr.bf16.mxu0 0
        %486 = vmatpush2.bf16.msra.mxu0 0
        %487 = vmatprep.mubr.bf16.mxu0 0
        %488 = vmatmul.mubr.bf16.gmra.mxu0 %v449
        %v489 = vpop.f32.mrf.mxu0
        %v490 = vadd.f32 %v440, %v489
        %v491 = vpop.f32.mrf.mxu0
        %v492 = vpop.f32.mrf.mxu0
        %v493 = vadd.f32 %v441, %v492
        %v494 = vpop.f32.mrf.mxu0
        %495 = vdwg.mxu0
        %v496 = vld [vmem:[%s5 + $0x2] ss:$0 sm:$0xff]
        %v497 = vadd.f32 %v490, %v496
        %v498 = vadd.f32 %v493, %v496
        %v499 = vmul.f32 %v497, 0.2
        %v500 = vmul.f32 %v498, 0.2
        %v501 = vmax.f32 %v497, %v499
        %v502 = vmax.f32 %v498, %v500
        %v503 = vld [vmem:[#allocation4 + $0x40] sm:$0xf]
        %v504 = vld [vmem:[#allocation4 + $0x44] sm:$0xf]
        %v505 = vpack.c.bf16 %v502, %v501
        %v506 = vld [vmem:[#allocation4 + $0x20] sm:$0xf]
        %v507 = vld [vmem:[#allocation4 + $0x24] sm:$0xf]
        %v508 = vld [vmem:[#allocation4 + $0x28] sm:$0xf]
        %v509 = vld [vmem:[#allocation4 + $0x2c] sm:$0xf]
        %v510 = vpack.c.bf16 %v418, %v417
        %v515 = vunpack.c.l.b16 %v506
        %v516 = vunpack.c.l.b16 %v507
        %v517 = vunpack.c.l.b16 %v508
        %v518 = vunpack.c.l.b16 %v509
        %v519 = vpack.c.b16 %v516, %v515
        %v520 = vpack.c.b16 %v518, %v517
        %vm523 = vcmask 261120
        %v525 = vsel %vm523, %v510, 0
        %527 = vmatprep.subr.bf16.mxu0 0
        %528 = vmatpush1.bf16.msra.mxu0 0
        %529 = vmatprep.subr.bf16.mxu0 0
        %530 = vmatpush1.bf16.msra.mxu0 0
        %531 = vmatprep.subr.bf16.mxu0 0
        %532 = vmatpush1.bf16.msra.mxu0 0
        %533 = vmatprep.subr.bf16.mxu0 0
        %534 = vmatpush1.bf16.msra.mxu0 0
        %535 = vmatprep.subr.bf16.mxu0 0
        %536 = vmatpush1.bf16.msra.mxu0 0
        %537 = vmatprep.subr.bf16.mxu0 0
        %538 = vmatpush1.bf16.msra.mxu0 0
        %539 = vmatprep.subr.bf16.mxu0 0
        %540 = vmatpush1.bf16.msra.mxu0 %v520
        %541 = vmatprep.subr.bf16.mxu0 0
        %542 = vmatpush1.bf16.msra.mxu0 %v519
        %543 = vmatprep.subr.bf16.mxu0 0
        %544 = vmatpush2.bf16.msra.mxu0 0
        %545 = vmatprep.subr.bf16.mxu0 0
        %546 = vmatpush2.bf16.msra.mxu0 0
        %547 = vmatprep.subr.bf16.mxu0 0
        %548 = vmatpush2.bf16.msra.mxu0 0
        %549 = vmatprep.subr.bf16.mxu0 0
        %550 = vmatpush2.bf16.msra.mxu0 0
        %551 = vmatprep.subr.bf16.mxu0 0
        %552 = vmatpush2.bf16.msra.mxu0 0
        %553 = vmatprep.subr.bf16.mxu0 0
        %554 = vmatpush2.bf16.msra.mxu0 0
        %555 = vmatprep.subr.bf16.mxu0 0
        %556 = vmatpush2.bf16.msra.mxu0 0
        %557 = vmatprep.subr.bf16.mxu0 0
        %558 = vmatpush2.bf16.msra.mxu0 0
        %559 = vmatprep.mubr.bf16.mxu0 0
        %560 = vmatmul.mubr.bf16.gmra.mxu0 %v525
        %v561 = vpop.f32.mrf.mxu0
        %v562 = vadd.f32 0.0, %v561
        %v563 = vpop.f32.mrf.mxu0
        %v564 = vpop.f32.mrf.mxu0
        %v565 = vadd.f32 0.0, %v564
        %v566 = vpop.f32.mrf.mxu0
        %567 = vdwg.mxu0
        %v570 = vunpack.c.l.b16 %v503
        %v571 = vunpack.c.l.b16 %v504
        %v572 = vpack.c.b16 %v571, %v570
        %vm574 = vcmask 130048
        %v576 = vsel %vm574, %v505, 0
        %578 = vmatprep.subr.bf16.mxu0 0
        %579 = vmatpush1.bf16.msra.mxu0 0
        %580 = vmatprep.subr.bf16.mxu0 0
        %581 = vmatpush1.bf16.msra.mxu0 0
        %582 = vmatprep.subr.bf16.mxu0 0
        %583 = vmatpush1.bf16.msra.mxu0 0
        %584 = vmatprep.subr.bf16.mxu0 0
        %585 = vmatpush1.bf16.msra.mxu0 0
        %586 = vmatprep.subr.bf16.mxu0 0
        %587 = vmatpush1.bf16.msra.mxu0 0
        %588 = vmatprep.subr.bf16.mxu0 0
        %589 = vmatpush1.bf16.msra.mxu0 0
        %590 = vmatprep.subr.bf16.mxu0 0
        %591 = vmatpush1.bf16.msra.mxu0 0
        %592 = vmatprep.subr.bf16.mxu0 0
        %593 = vmatpush1.bf16.msra.mxu0 %v572
        %594 = vmatprep.subr.bf16.mxu0 0
        %595 = vmatpush2.bf16.msra.mxu0 0
        %596 = vmatprep.subr.bf16.mxu0 0
        %597 = vmatpush2.bf16.msra.mxu0 0
        %598 = vmatprep.subr.bf16.mxu0 0
        %599 = vmatpush2.bf16.msra.mxu0 0
        %600 = vmatprep.subr.bf16.mxu0 0
        %601 = vmatpush2.bf16.msra.mxu0 0
        %602 = vmatprep.subr.bf16.mxu0 0
        %603 = vmatpush2.bf16.msra.mxu0 0
        %604 = vmatprep.subr.bf16.mxu0 0
        %605 = vmatpush2.bf16.msra.mxu0 0
        %606 = vmatprep.subr.bf16.mxu0 0
        %607 = vmatpush2.bf16.msra.mxu0 0
        %608 = vmatprep.subr.bf16.mxu0 0
        %609 = vmatpush2.bf16.msra.mxu0 0
        %610 = vmatprep.mubr.bf16.mxu0 0
        %611 = vmatmul.mubr.bf16.gmra.mxu0 %v576
        %v612 = vpop.f32.mrf.mxu0
        %v613 = vadd.f32 %v562, %v612
        %v614 = vpop.f32.mrf.mxu0
        %v615 = vpop.f32.mrf.mxu0
        %v616 = vadd.f32 %v565, %v615
        %v617 = vpop.f32.mrf.mxu0
        %618 = vdwg.mxu0
        %v619 = vld [vmem:[%s5 + $0x1] ss:$0 sm:$0xff]
        %v620 = vadd.f32 %v613, %v619
        %v621 = vadd.f32 %v616, %v619
        %v622 = vld [vmem:[#allocation4 + $0x48] sm:$0xf]
        %v623 = vld [vmem:[#allocation4 + $0x4c] sm:$0xf]
        %v624 = vpack.c.bf16 %v621, %v620
        %v625 = vld [vmem:[%s5 + $0x3] ss:$0 sm:$0xff]
        %v628 = vunpack.c.l.b16 %v622
        %v629 = vunpack.c.l.b16 %v623
        %v630 = vpack.c.b16 %v629, %v628
        %v633 = vsel %vm574, %v624, 0
        %635 = vmatprep.subr.bf16.mxu0 0
        %636 = vmatpush1.bf16.msra.mxu0 0
        %637 = vmatprep.subr.bf16.mxu0 0
        %638 = vmatpush1.bf16.msra.mxu0 0
        %639 = vmatprep.subr.bf16.mxu0 0
        %640 = vmatpush1.bf16.msra.mxu0 0
        %641 = vmatprep.subr.bf16.mxu0 0
        %642 = vmatpush1.bf16.msra.mxu0 0
        %643 = vmatprep.subr.bf16.mxu0 0
        %644 = vmatpush1.bf16.msra.mxu0 0
        %645 = vmatprep.subr.bf16.mxu0 0
        %646 = vmatpush1.bf16.msra.mxu0 0
        %647 = vmatprep.subr.bf16.mxu0 0
        %648 = vmatpush1.bf16.msra.mxu0 0
        %649 = vmatprep.subr.bf16.mxu0 0
        %650 = vmatpush1.bf16.msra.mxu0 %v630
        %651 = vmatprep.subr.bf16.mxu0 0
        %652 = vmatpush2.bf16.msra.mxu0 0
        %653 = vmatprep.subr.bf16.mxu0 0
        %654 = vmatpush2.bf16.msra.mxu0 0
        %655 = vmatprep.subr.bf16.mxu0 0
        %656 = vmatpush2.bf16.msra.mxu0 0
        %657 = vmatprep.subr.bf16.mxu0 0
        %658 = vmatpush2.bf16.msra.mxu0 0
        %659 = vmatprep.subr.bf16.mxu0 0
        %660 = vmatpush2.bf16.msra.mxu0 0
        %661 = vmatprep.subr.bf16.mxu0 0
        %662 = vmatpush2.bf16.msra.mxu0 0
        %663 = vmatprep.subr.bf16.mxu0 0
        %664 = vmatpush2.bf16.msra.mxu0 0
        %665 = vmatprep.subr.bf16.mxu0 0
        %666 = vmatpush2.bf16.msra.mxu0 0
        %667 = vmatprep.mubr.bf16.mxu0 0
        %668 = vmatmul.mubr.bf16.gmra.mxu0 %v633
        %v669 = vpop.f32.mrf.mxu0
        %v670 = vadd.f32 %v625, %v669
        %v671 = vpop.f32.mrf.mxu0
        %v672 = vpop.f32.mrf.mxu0
        %v673 = vadd.f32 %v625, %v672
        %v674 = vpop.f32.mrf.mxu0
        %675 = vdwg.mxu0
        %v676 = vmul.f32 %v670, 0.2
        %v677 = vmul.f32 %v673, 0.2
        %v678 = vmax.f32 %v670, %v676
        %v679 = vmax.f32 %v673, %v677
        %v680 = vld [vmem:[#allocation4 + $0x50] sm:$0xf]
        %v681 = vld [vmem:[#allocation4 + $0x54] sm:$0xf]
        %v682 = vld [vmem:[#allocation4 + $0x58] sm:$0xf]
        %v683 = vld [vmem:[#allocation4 + $0x5c] sm:$0xf]
        %v684 = vld [vmem:[#allocation4 + $0x60] sm:$0xf]
        %v685 = vld [vmem:[#allocation4 + $0x64] sm:$0xf]
        %v686 = vld [vmem:[#allocation4 + $0x68] sm:$0xf]
        %v687 = vld [vmem:[#allocation4 + $0x6c] sm:$0xf]
        %v688 = vpack.c.bf16 %v679, %v678
        %v689 = vld [vmem:[%s5 + $0x4] ss:$0 sm:$0xff]
        %v698 = vunpack.c.l.b16 %v680
        %v699 = vunpack.c.l.b16 %v681
        %v700 = vunpack.c.l.b16 %v682
        %v701 = vunpack.c.l.b16 %v683
        %v702 = vunpack.c.l.b16 %v684
        %v703 = vunpack.c.l.b16 %v685
        %v704 = vunpack.c.l.b16 %v686
        %v705 = vunpack.c.l.b16 %v687
        %v706 = vpack.c.b16 %v699, %v698
        %v707 = vpack.c.b16 %v701, %v700
        %v708 = vpack.c.b16 %v703, %v702
        %v709 = vpack.c.b16 %v705, %v704
        %v715 = vsel %vm370, %v688, 0
        %717 = vmatprep.subr.bf16.mxu0 0
        %718 = vmatpush1.bf16.msra.mxu0 0
        %719 = vmatprep.subr.bf16.mxu0 0
        %720 = vmatpush1.bf16.msra.mxu0 0
        %721 = vmatprep.subr.bf16.mxu0 0
        %722 = vmatpush1.bf16.msra.mxu0 0
        %723 = vmatprep.subr.bf16.mxu0 0
        %724 = vmatpush1.bf16.msra.mxu0 0
        %725 = vmatprep.subr.bf16.mxu0 0
        %726 = vmatpush1.bf16.msra.mxu0 %v709
        %727 = vmatprep.subr.bf16.mxu0 0
        %728 = vmatpush1.bf16.msra.mxu0 %v708
        %729 = vmatprep.subr.bf16.mxu0 0
        %730 = vmatpush1.bf16.msra.mxu0 %v707
        %731 = vmatprep.subr.bf16.mxu0 0
        %732 = vmatpush1.bf16.msra.mxu0 %v706
        %733 = vmatprep.subr.bf16.mxu0 0
        %734 = vmatpush2.bf16.msra.mxu0 0
        %735 = vmatprep.subr.bf16.mxu0 0
        %736 = vmatpush2.bf16.msra.mxu0 0
        %737 = vmatprep.subr.bf16.mxu0 0
        %738 = vmatpush2.bf16.msra.mxu0 0
        %739 = vmatprep.subr.bf16.mxu0 0
        %740 = vmatpush2.bf16.msra.mxu0 0
        %741 = vmatprep.subr.bf16.mxu0 0
        %742 = vmatpush2.bf16.msra.mxu0 0
        %743 = vmatprep.subr.bf16.mxu0 0
        %744 = vmatpush2.bf16.msra.mxu0 0
        %745 = vmatprep.subr.bf16.mxu0 0
        %746 = vmatpush2.bf16.msra.mxu0 0
        %747 = vmatprep.subr.bf16.mxu0 0
        %748 = vmatpush2.bf16.msra.mxu0 0
        %749 = vmatprep.mubr.bf16.mxu0 0
        %750 = vmatmul.mubr.bf16.gmra.mxu0 %v715
        %v751 = vpop.f32.mrf.mxu0
        %v752 = vadd.f32 %v689, %v751
        %v753 = vpop.f32.mrf.mxu0
        %v754 = vpop.f32.mrf.mxu0
        %v755 = vadd.f32 %v689, %v754
        %v756 = vpop.f32.mrf.mxu0
        %757 = vdwg.mxu0
        %v758 = vmul.f32 %v752, 0.2
        %v759 = vmul.f32 %v755, 0.2
        %v760 = vmax.f32 %v752, %v758
        %v761 = vmax.f32 %v755, %v759
        %v762 = vld [vmem:[#allocation2] sm:$0xff]
        %v763 = vld [vmem:[#allocation2 + $0x8] sm:$0xff]
        %v764 = vld [vmem:[#allocation2 + $0x10] sm:$0xff]
        %v765 = vld [vmem:[#allocation2 + $0x18] sm:$0xff]
        %v766 = vld [vmem:[#allocation2 + $0x20] sm:$0xff]
        %v767 = vld [vmem:[#allocation2 + $0x28] sm:$0xff]
        %v768 = vld [vmem:[#allocation2 + $0x30] sm:$0xff]
        %v769 = vld [vmem:[#allocation2 + $0x38] sm:$0xff]
        %v770 = vld [vmem:[#allocation2 + $0x40] sm:$0xff]
        %v771 = vld [vmem:[#allocation2 + $0x48] sm:$0xff]
        %v772 = vld [vmem:[#allocation2 + $0x50] sm:$0xff]
        %v773 = vld [vmem:[#allocation2 + $0x58] sm:$0xff]
        %v774 = vld [vmem:[#allocation2 + $0x60] sm:$0xff]
        %v775 = vld [vmem:[#allocation2 + $0x68] sm:$0xff]
        %v776 = vld [vmem:[#allocation2 + $0x70] sm:$0xff]
        %v777 = vld [vmem:[#allocation2 + $0x78] sm:$0xff]
        %v778 = vpack.c.bf16 %v761, %v760
        %s779 = scalar_lea.vmem %s5, 5
        %v780 = vld [vmem:[%s779] ss:$8 sm:$0x3]
        %v782 = vlaneseq
        %v783 = vshrl.u32 %v782, 7
        %v784 = vsub.s32 0, %v783
        %v785 = vrot.slane %v780, %v784
        %v786 = vlaneseq
        %v787 = vshrl.u32 %v786, 7
        %v788 = vsub.s32 1, %v787
        %v789 = vrot.slane %v780, %v788
        %v808 = vunpack.c.l.b16 %v762
        %v809 = vunpack.c.h.b16 %v762
        %v810 = vunpack.c.l.b16 %v763
        %v811 = vunpack.c.h.b16 %v763
        %v812 = vunpack.c.l.b16 %v764
        %v813 = vunpack.c.h.b16 %v764
        %v814 = vunpack.c.l.b16 %v765
        %v815 = vunpack.c.h.b16 %v765
        %v816 = vunpack.c.l.b16 %v766
        %v817 = vunpack.c.h.b16 %v766
        %v818 = vunpack.c.l.b16 %v767
        %v819 = vunpack.c.h.b16 %v767
        %v820 = vunpack.c.l.b16 %v768
        %v821 = vunpack.c.h.b16 %v768
        %v822 = vunpack.c.l.b16 %v769
        %v823 = vunpack.c.h.b16 %v769
        %v824 = vunpack.c.l.b16 %v770
        %v825 = vunpack.c.h.b16 %v770
        %v826 = vunpack.c.l.b16 %v771
        %v827 = vunpack.c.h.b16 %v771
        %v828 = vunpack.c.l.b16 %v772
        %v829 = vunpack.c.h.b16 %v772
        %v830 = vunpack.c.l.b16 %v773
        %v831 = vunpack.c.h.b16 %v773
        %v832 = vunpack.c.l.b16 %v774
        %v833 = vunpack.c.h.b16 %v774
        %v834 = vunpack.c.l.b16 %v775
        %v835 = vunpack.c.h.b16 %v775
        %v836 = vunpack.c.l.b16 %v776
        %v837 = vunpack.c.h.b16 %v776
        %v838 = vunpack.c.l.b16 %v777
        %v839 = vunpack.c.h.b16 %v777
        %v840 = vpack.c.b16 %v810, %v808
        %v841 = vpack.c.b16 %v811, %v809
        %v842 = vpack.c.b16 %v814, %v812
        %v843 = vpack.c.b16 %v815, %v813
        %v844 = vpack.c.b16 %v818, %v816
        %v845 = vpack.c.b16 %v819, %v817
        %v846 = vpack.c.b16 %v822, %v820
        %v847 = vpack.c.b16 %v823, %v821
        %v848 = vpack.c.b16 %v826, %v824
        %v849 = vpack.c.b16 %v827, %v825
        %v850 = vpack.c.b16 %v830, %v828
        %v851 = vpack.c.b16 %v831, %v829
        %v852 = vpack.c.b16 %v834, %v832
        %v853 = vpack.c.b16 %v835, %v833
        %v854 = vpack.c.b16 %v838, %v836
        %v855 = vpack.c.b16 %v839, %v837
        %872 = vmatprep.subr.bf16.mxu0 %v855
        %873 = vmatpush1.bf16.msra.mxu0 %v854
        %874 = vmatprep.subr.bf16.mxu0 %v853
        %875 = vmatpush1.bf16.msra.mxu0 %v852
        %876 = vmatprep.subr.bf16.mxu0 %v851
        %877 = vmatpush1.bf16.msra.mxu0 %v850
        %878 = vmatprep.subr.bf16.mxu0 %v849
        %879 = vmatpush1.bf16.msra.mxu0 %v848
        %880 = vmatprep.subr.bf16.mxu0 %v847
        %881 = vmatpush1.bf16.msra.mxu0 %v846
        %882 = vmatprep.subr.bf16.mxu0 %v845
        %883 = vmatpush1.bf16.msra.mxu0 %v844
        %884 = vmatprep.subr.bf16.mxu0 %v843
        %885 = vmatpush1.bf16.msra.mxu0 %v842
        %886 = vmatprep.subr.bf16.mxu0 %v841
        %887 = vmatpush1.bf16.msra.mxu0 %v840
        %888 = vmatprep.subr.bf16.mxu0 0
        %889 = vmatpush2.bf16.msra.mxu0 0
        %890 = vmatprep.subr.bf16.mxu0 0
        %891 = vmatpush2.bf16.msra.mxu0 0
        %892 = vmatprep.subr.bf16.mxu0 0
        %893 = vmatpush2.bf16.msra.mxu0 0
        %894 = vmatprep.subr.bf16.mxu0 0
        %895 = vmatpush2.bf16.msra.mxu0 0
        %896 = vmatprep.subr.bf16.mxu0 0
        %897 = vmatpush2.bf16.msra.mxu0 0
        %898 = vmatprep.subr.bf16.mxu0 0
        %899 = vmatpush2.bf16.msra.mxu0 0
        %900 = vmatprep.subr.bf16.mxu0 0
        %901 = vmatpush2.bf16.msra.mxu0 0
        %902 = vmatprep.subr.bf16.mxu0 0
        %903 = vmatpush2.bf16.msra.mxu0 0
        %904 = vmatprep.mubr.bf16.mxu0 0
        %905 = vmatmul.mubr.bf16.gmra.mxu0 %v778
        %v906 = vpop.f32.mrf.mxu0
        %v907 = vadd.f32 %v785, %v906
        %v908 = vpop.f32.mrf.mxu0
        %v909 = vadd.f32 %v789, %v908
        %v910 = vpop.f32.mrf.mxu0
        %v911 = vadd.f32 %v785, %v910
        %v912 = vpop.f32.mrf.mxu0
        %v913 = vadd.f32 %v789, %v912
        %914 = vdwg.mxu0
        %v915 = vmul.f32 %v907, 0.2
        %v916 = vmul.f32 %v909, 0.2
        %v917 = vmul.f32 %v911, 0.2
        %v918 = vmul.f32 %v913, 0.2
        %v919 = vmax.f32 %v907, %v915
        %v920 = vmax.f32 %v909, %v916
        %v921 = vmax.f32 %v911, %v917
        %v922 = vmax.f32 %v913, %v918
        %v923 = vld [vmem:[#allocation4 + $0x70] sm:$0xf]
        %v924 = vld [vmem:[#allocation4 + $0x74] sm:$0xf]
        %v925 = vld [vmem:[#allocation4 + $0x78] sm:$0xf]
        %v926 = vld [vmem:[#allocation4 + $0x7c] sm:$0xf]
        %v927 = vld [vmem:[#allocation4 + $0x80] sm:$0xf]
        %v928 = vld [vmem:[#allocation4 + $0x84] sm:$0xf]
        %v929 = vld [vmem:[#allocation4 + $0x88] sm:$0xf]
        %v930 = vld [vmem:[#allocation4 + $0x8c] sm:$0xf]
        %v931 = vld [vmem:[#allocation4 + $0x90] sm:$0xf]
        %v932 = vld [vmem:[#allocation4 + $0x94] sm:$0xf]
        %v933 = vld [vmem:[#allocation4 + $0x98] sm:$0xf]
        %v934 = vld [vmem:[#allocation4 + $0x9c] sm:$0xf]
        %v935 = vld [vmem:[#allocation4 + $0xa0] sm:$0xf]
        %v936 = vld [vmem:[#allocation4 + $0xa4] sm:$0xf]
        %v937 = vld [vmem:[#allocation4 + $0xa8] sm:$0xf]
        %v938 = vld [vmem:[#allocation4 + $0xac] sm:$0xf]
        %v939 = vld [vmem:[#allocation4 + $0xb0] sm:$0xf]
        %v940 = vld [vmem:[#allocation4 + $0xb4] sm:$0xf]
        %v941 = vld [vmem:[#allocation4 + $0xb8] sm:$0xf]
        %v942 = vld [vmem:[#allocation4 + $0xbc] sm:$0xf]
        %v943 = vld [vmem:[#allocation4 + $0xc0] sm:$0xf]
        %v944 = vld [vmem:[#allocation4 + $0xc4] sm:$0xf]
        %v945 = vld [vmem:[#allocation4 + $0xc8] sm:$0xf]
        %v946 = vld [vmem:[#allocation4 + $0xcc] sm:$0xf]
        %v947 = vld [vmem:[#allocation4 + $0xd0] sm:$0xf]
        %v948 = vld [vmem:[#allocation4 + $0xd4] sm:$0xf]
        %v949 = vld [vmem:[#allocation4 + $0xd8] sm:$0xf]
        %v950 = vld [vmem:[#allocation4 + $0xdc] sm:$0xf]
        %v951 = vld [vmem:[#allocation4 + $0xe0] sm:$0xf]
        %v952 = vld [vmem:[#allocation4 + $0xe4] sm:$0xf]
        %v953 = vld [vmem:[#allocation4 + $0xe8] sm:$0xf]
        %v954 = vld [vmem:[#allocation4 + $0xec] sm:$0xf]
        %v955 = vpack.c.bf16 %v921, %v919
        %v956 = vpack.c.bf16 %v922, %v920
        %v957 = vld [vmem:[%s5 + $0x6] ss:$0 sm:$0xff]
        %v990 = vunpack.c.l.b16 %v923
        %v991 = vunpack.c.l.b16 %v924
        %v992 = vunpack.c.l.b16 %v925
        %v993 = vunpack.c.l.b16 %v926
        %v994 = vunpack.c.l.b16 %v927
        %v995 = vunpack.c.l.b16 %v928
        %v996 = vunpack.c.l.b16 %v929
        %v997 = vunpack.c.l.b16 %v930
        %v998 = vunpack.c.l.b16 %v931
        %v999 = vunpack.c.l.b16 %v932
        %v1000 = vunpack.c.l.b16 %v933
        %v1001 = vunpack.c.l.b16 %v934
        %v1002 = vunpack.c.l.b16 %v935
        %v1003 = vunpack.c.l.b16 %v936
        %v1004 = vunpack.c.l.b16 %v937
        %v1005 = vunpack.c.l.b16 %v938
        %v1006 = vunpack.c.l.b16 %v939
        %v1007 = vunpack.c.l.b16 %v940
        %v1008 = vunpack.c.l.b16 %v941
        %v1009 = vunpack.c.l.b16 %v942
        %v1010 = vunpack.c.l.b16 %v943
        %v1011 = vunpack.c.l.b16 %v944
        %v1012 = vunpack.c.l.b16 %v945
        %v1013 = vunpack.c.l.b16 %v946
        %v1014 = vunpack.c.l.b16 %v947
        %v1015 = vunpack.c.l.b16 %v948
        %v1016 = vunpack.c.l.b16 %v949
        %v1017 = vunpack.c.l.b16 %v950
        %v1018 = vunpack.c.l.b16 %v951
        %v1019 = vunpack.c.l.b16 %v952
        %v1020 = vunpack.c.l.b16 %v953
        %v1021 = vunpack.c.l.b16 %v954
        %v1022 = vpack.c.b16 %v991, %v990
        %v1023 = vpack.c.b16 %v993, %v992
        %v1024 = vpack.c.b16 %v995, %v994
        %v1025 = vpack.c.b16 %v997, %v996
        %v1026 = vpack.c.b16 %v999, %v998
        %v1027 = vpack.c.b16 %v1001, %v1000
        %v1028 = vpack.c.b16 %v1003, %v1002
        %v1029 = vpack.c.b16 %v1005, %v1004
        %v1030 = vpack.c.b16 %v1007, %v1006
        %v1031 = vpack.c.b16 %v1009, %v1008
        %v1032 = vpack.c.b16 %v1011, %v1010
        %v1033 = vpack.c.b16 %v1013, %v1012
        %v1034 = vpack.c.b16 %v1015, %v1014
        %v1035 = vpack.c.b16 %v1017, %v1016
        %v1036 = vpack.c.b16 %v1019, %v1018
        %v1037 = vpack.c.b16 %v1021, %v1020
        %1054 = vmatprep.subr.bf16.mxu0 0
        %1055 = vmatpush1.bf16.msra.mxu0 %v1029
        %1056 = vmatprep.subr.bf16.mxu0 0
        %1057 = vmatpush1.bf16.msra.mxu0 %v1028
        %1058 = vmatprep.subr.bf16.mxu0 0
        %1059 = vmatpush1.bf16.msra.mxu0 %v1027
        %1060 = vmatprep.subr.bf16.mxu0 0
        %1061 = vmatpush1.bf16.msra.mxu0 %v1026
        %1062 = vmatprep.subr.bf16.mxu0 0
        %1063 = vmatpush1.bf16.msra.mxu0 %v1025
        %1064 = vmatprep.subr.bf16.mxu0 0
        %1065 = vmatpush1.bf16.msra.mxu0 %v1024
        %1066 = vmatprep.subr.bf16.mxu0 0
        %1067 = vmatpush1.bf16.msra.mxu0 %v1023
        %1068 = vmatprep.subr.bf16.mxu0 0
        %1069 = vmatpush1.bf16.msra.mxu0 %v1022
        %1070 = vmatprep.subr.bf16.mxu0 0
        %1071 = vmatpush2.bf16.msra.mxu0 %v1037
        %1072 = vmatprep.subr.bf16.mxu0 0
        %1073 = vmatpush2.bf16.msra.mxu0 %v1036
        %1074 = vmatprep.subr.bf16.mxu0 0
        %1075 = vmatpush2.bf16.msra.mxu0 %v1035
        %1076 = vmatprep.subr.bf16.mxu0 0
        %1077 = vmatpush2.bf16.msra.mxu0 %v1034
        %1078 = vmatprep.subr.bf16.mxu0 0
        %1079 = vmatpush2.bf16.msra.mxu0 %v1033
        %1080 = vmatprep.subr.bf16.mxu0 0
        %1081 = vmatpush2.bf16.msra.mxu0 %v1032
        %1082 = vmatprep.subr.bf16.mxu0 0
        %1083 = vmatpush2.bf16.msra.mxu0 %v1031
        %1084 = vmatprep.subr.bf16.mxu0 0
        %1085 = vmatpush2.bf16.msra.mxu0 %v1030
        %1086 = vmatprep.mubr.bf16.mxu0 %v956
        %1087 = vmatmul.mubr.bf16.gmra.mxu0 %v955
        %v1088 = vpop.f32.mrf.mxu0
        %v1089 = vadd.f32 %v957, %v1088
        %v1090 = vpop.f32.mrf.mxu0
        %v1091 = vpop.f32.mrf.mxu0
        %v1092 = vadd.f32 %v957, %v1091
        %v1093 = vpop.f32.mrf.mxu0
        %1094 = vdwg.mxu0
        %v1095 = vmul.f32 %v1089, 0.2
        %v1096 = vmul.f32 %v1092, 0.2
        %v1097 = vmax.f32 %v1089, %v1095
        %v1098 = vmax.f32 %v1092, %v1096
        %v1099 = vld [vmem:[#allocation4 + $0xf0] sm:$0xf]
        %v1100 = vld [vmem:[#allocation4 + $0xf4] sm:$0xf]
        %v1101 = vld [vmem:[#allocation4 + $0xf8] sm:$0xf]
        %v1102 = vld [vmem:[#allocation4 + $0xfc] sm:$0xf]
        %v1103 = vld [vmem:[#allocation4 + $0x100] sm:$0xf]
        %v1104 = vld [vmem:[#allocation4 + $0x104] sm:$0xf]
        %v1105 = vld [vmem:[#allocation4 + $0x108] sm:$0xf]
        %v1106 = vld [vmem:[#allocation4 + $0x10c] sm:$0xf]
        %v1107 = vld [vmem:[#allocation4 + $0x110] sm:$0xf]
        %v1108 = vld [vmem:[#allocation4 + $0x114] sm:$0xf]
        %v1109 = vld [vmem:[#allocation4 + $0x118] sm:$0xf]
        %v1110 = vld [vmem:[#allocation4 + $0x11c] sm:$0xf]
        %v1111 = vld [vmem:[#allocation4 + $0x120] sm:$0xf]
        %v1112 = vld [vmem:[#allocation4 + $0x124] sm:$0xf]
        %v1113 = vld [vmem:[#allocation4 + $0x128] sm:$0xf]
        %v1114 = vld [vmem:[#allocation4 + $0x12c] sm:$0xf]
        %v1115 = vpack.c.bf16 %v1098, %v1097
        %v1116 = vld [vmem:[%s5 + $0x7] ss:$0 sm:$0xff]
        %v1133 = vunpack.c.l.b16 %v1099
        %v1134 = vunpack.c.l.b16 %v1100
        %v1135 = vunpack.c.l.b16 %v1101
        %v1136 = vunpack.c.l.b16 %v1102
        %v1137 = vunpack.c.l.b16 %v1103
        %v1138 = vunpack.c.l.b16 %v1104
        %v1139 = vunpack.c.l.b16 %v1105
        %v1140 = vunpack.c.l.b16 %v1106
        %v1141 = vunpack.c.l.b16 %v1107
        %v1142 = vunpack.c.l.b16 %v1108
        %v1143 = vunpack.c.l.b16 %v1109
        %v1144 = vunpack.c.l.b16 %v1110
        %v1145 = vunpack.c.l.b16 %v1111
        %v1146 = vunpack.c.l.b16 %v1112
        %v1147 = vunpack.c.l.b16 %v1113
        %v1148 = vunpack.c.l.b16 %v1114
        %v1149 = vpack.c.b16 %v1134, %v1133
        %v1150 = vpack.c.b16 %v1136, %v1135
        %v1151 = vpack.c.b16 %v1138, %v1137
        %v1152 = vpack.c.b16 %v1140, %v1139
        %v1153 = vpack.c.b16 %v1142, %v1141
        %v1154 = vpack.c.b16 %v1144, %v1143
        %v1155 = vpack.c.b16 %v1146, %v1145
        %v1156 = vpack.c.b16 %v1148, %v1147
        %1165 = vmatprep.subr.bf16.mxu0 0
        %1166 = vmatpush1.bf16.msra.mxu0 %v1156
        %1167 = vmatprep.subr.bf16.mxu0 0
        %1168 = vmatpush1.bf16.msra.mxu0 %v1155
        %1169 = vmatprep.subr.bf16.mxu0 0
        %1170 = vmatpush1.bf16.msra.mxu0 %v1154
        %1171 = vmatprep.subr.bf16.mxu0 0
        %1172 = vmatpush1.bf16.msra.mxu0 %v1153
        %1173 = vmatprep.subr.bf16.mxu0 0
        %1174 = vmatpush1.bf16.msra.mxu0 %v1152
        %1175 = vmatprep.subr.bf16.mxu0 0
        %1176 = vmatpush1.bf16.msra.mxu0 %v1151
        %1177 = vmatprep.subr.bf16.mxu0 0
        %1178 = vmatpush1.bf16.msra.mxu0 %v1150
        %1179 = vmatprep.subr.bf16.mxu0 0
        %1180 = vmatpush1.bf16.msra.mxu0 %v1149
        %1181 = vmatprep.subr.bf16.mxu0 0
        %1182 = vmatpush2.bf16.msra.mxu0 0
        %1183 = vmatprep.subr.bf16.mxu0 0
        %1184 = vmatpush2.bf16.msra.mxu0 0
        %1185 = vmatprep.subr.bf16.mxu0 0
        %1186 = vmatpush2.bf16.msra.mxu0 0
        %1187 = vmatprep.subr.bf16.mxu0 0
        %1188 = vmatpush2.bf16.msra.mxu0 0
        %1189 = vmatprep.subr.bf16.mxu0 0
        %1190 = vmatpush2.bf16.msra.mxu0 0
        %1191 = vmatprep.subr.bf16.mxu0 0
        %1192 = vmatpush2.bf16.msra.mxu0 0
        %1193 = vmatprep.subr.bf16.mxu0 0
        %1194 = vmatpush2.bf16.msra.mxu0 0
        %1195 = vmatprep.subr.bf16.mxu0 0
        %1196 = vmatpush2.bf16.msra.mxu0 0
        %1197 = vmatprep.mubr.bf16.mxu0 0
        %1198 = vmatmul.mubr.bf16.gmra.mxu0 %v1115
        %v1199 = vpop.f32.mrf.mxu0
        %v1200 = vadd.f32 %v1116, %v1199
        %v1201 = vpop.f32.mrf.mxu0
        %v1202 = vpop.f32.mrf.mxu0
        %v1203 = vadd.f32 %v1116, %v1202
        %v1204 = vpop.f32.mrf.mxu0
        %1205 = vdwg.mxu0
        %v1206 = vmul.f32 %v1200, 0.2
        %v1207 = vmul.f32 %v1203, 0.2
        %v1208 = vmax.f32 %v1200, %v1206
        %v1209 = vmax.f32 %v1203, %v1207
        %v1210 = vld [vmem:[#allocation4 + $0x130] sm:$0xf]
        %v1211 = vld [vmem:[#allocation4 + $0x134] sm:$0xf]
        %v1212 = vld [vmem:[#allocation4 + $0x138] sm:$0xf]
        %v1213 = vld [vmem:[#allocation4 + $0x13c] sm:$0xf]
        %v1214 = vld [vmem:[#allocation4 + $0x140] sm:$0xf]
        %v1215 = vld [vmem:[#allocation4 + $0x144] sm:$0xf]
        %v1216 = vld [vmem:[#allocation4 + $0x148] sm:$0xf]
        %v1217 = vld [vmem:[#allocation4 + $0x14c] sm:$0xf]
        %v1218 = vpack.c.bf16 %v1209, %v1208
        %v1219 = vld [vmem:[%s5 + $0x10] ss:$0 sm:$0xff]
        %v1228 = vunpack.c.l.b16 %v1210
        %v1229 = vunpack.c.l.b16 %v1211
        %v1230 = vunpack.c.l.b16 %v1212
        %v1231 = vunpack.c.l.b16 %v1213
        %v1232 = vunpack.c.l.b16 %v1214
        %v1233 = vunpack.c.l.b16 %v1215
        %v1234 = vunpack.c.l.b16 %v1216
        %v1235 = vunpack.c.l.b16 %v1217
        %v1236 = vpack.c.b16 %v1229, %v1228
        %v1237 = vpack.c.b16 %v1231, %v1230
        %v1238 = vpack.c.b16 %v1233, %v1232
        %v1239 = vpack.c.b16 %v1235, %v1234
        %v1245 = vsel %vm370, %v1218, 0
        %1247 = vmatprep.subr.bf16.mxu0 0
        %1248 = vmatpush1.bf16.msra.mxu0 0
        %1249 = vmatprep.subr.bf16.mxu0 0
        %1250 = vmatpush1.bf16.msra.mxu0 0
        %1251 = vmatprep.subr.bf16.mxu0 0
        %1252 = vmatpush1.bf16.msra.mxu0 0
        %1253 = vmatprep.subr.bf16.mxu0 0
        %1254 = vmatpush1.bf16.msra.mxu0 0
        %1255 = vmatprep.subr.bf16.mxu0 0
        %1256 = vmatpush1.bf16.msra.mxu0 %v1239
        %1257 = vmatprep.subr.bf16.mxu0 0
        %1258 = vmatpush1.bf16.msra.mxu0 %v1238
        %1259 = vmatprep.subr.bf16.mxu0 0
        %1260 = vmatpush1.bf16.msra.mxu0 %v1237
        %1261 = vmatprep.subr.bf16.mxu0 0
        %1262 = vmatpush1.bf16.msra.mxu0 %v1236
        %1263 = vmatprep.subr.bf16.mxu0 0
        %1264 = vmatpush2.bf16.msra.mxu0 0
        %1265 = vmatprep.subr.bf16.mxu0 0
        %1266 = vmatpush2.bf16.msra.mxu0 0
        %1267 = vmatprep.subr.bf16.mxu0 0
        %1268 = vmatpush2.bf16.msra.mxu0 0
        %1269 = vmatprep.subr.bf16.mxu0 0
        %1270 = vmatpush2.bf16.msra.mxu0 0
        %1271 = vmatprep.subr.bf16.mxu0 0
        %1272 = vmatpush2.bf16.msra.mxu0 0
        %1273 = vmatprep.subr.bf16.mxu0 0
        %1274 = vmatpush2.bf16.msra.mxu0 0
        %1275 = vmatprep.subr.bf16.mxu0 0
        %1276 = vmatpush2.bf16.msra.mxu0 0
        %1277 = vmatprep.subr.bf16.mxu0 0
        %1278 = vmatpush2.bf16.msra.mxu0 0
        %1279 = vmatprep.mubr.bf16.mxu0 0
        %1280 = vmatmul.mubr.bf16.gmra.mxu0 %v1245
        %v1281 = vpop.f32.mrf.mxu0
        %v1282 = vadd.f32 %v1219, %v1281
        %v1283 = vpop.f32.mrf.mxu0
        %v1284 = vpop.f32.mrf.mxu0
        %v1285 = vadd.f32 %v1219, %v1284
        %v1286 = vpop.f32.mrf.mxu0
        %1287 = vdwg.mxu0
        %v1288 = vxor.u32 %v1282, 2147483648
        %v1289 = vxor.u32 %v1285, 2147483648
        %v1290 = vmul.f32 %v1288, 1.442695
        %v1291 = vpow.pop %v1290
        %v1292 = vmul.f32 %v1289, 1.442695
        %v1293 = vpow.pop %v1292
        %v1294 = vadd.f32 %v1291, 1.0
        %v1295 = vadd.f32 %v1293, 1.0
        %v1296 = vrcp.pop %v1294
        %v1297 = vmul.f32 1.0, %v1296
        %v1298 = vrcp.pop %v1295
        %v1299 = vmul.f32 1.0, %v1298
        %v1300 = vmul.f32 %v1297, 29.933607
        %v1301 = vmul.f32 %v1299, 29.933607
        %v1302 = vmul.f32 %v1300, 1.442695
        %v1303 = vpow.pop %v1302
        %v1304 = vmul.f32 %v1301, 1.442695
        %v1305 = vpow.pop %v1304
        %v1306 = vlaneseq
        %v1307 = vand.u32 %v1306, 127
        %vm1308 = vcmp.eq.s32.totalorder %v1307, 3
        %v1309 = vsel %vm1308, %v1303, %v1297
        %v1310 = vsel %vm1308, %v1305, %v1299
        %1311 = vst.msk [vmem:[%s327] sm:$0xff] %vm447, %v1309
        %1312 = vst.msk [vmem:[%s327 + $0x8] sm:$0xff] %vm447, %v1310
        %s1313 = smul.u32 2, %s19
        %p1314 = scmp.lt.s32.totalorder %s1313, 3
        %s1315 = scalar_select %p1314, %s1313, 3
        %s1316 = smul.addr %s1315, 8
        %s1317 = scalar_lea.vmem %s6, %s1316
        // Predicated region
        $region53: #{mlp1_forward.1} parent=43 // pred_check
          %p1318 = pneg %p178
        $region54: #{mlp1_forward.1} parent=43 // pred_check_branch
          %1320 = sbr.rel (%p1318) target = $region56
        $region55: #{mlp1_forward.1} parent=43 // pred_region
          %s1321 = smul.u32 2, %s19
        $region56: #{mlp1_forward.1} parent=43 // pred_fallthru
          _
      $region44: #{mlp1_forward.1} parent=5 // pred_fallthru
        _
      %p1322 = scmp.le.s32.totalorder 2, %s14
      // Predicated region
      $region57: #{mlp1_forward.1} parent=5 // pred_check
        %p1323 = pneg %p1322
      $region58: #{mlp1_forward.1} parent=5 // pred_check_branch
        %1325 = sbr.rel (%p1323) target = $region60
      $region59: #{mlp1_forward.1} parent=5 // pred_region
        %s1326 = ssub.s32 %s14, 2
        // Predicated region
        $region61: #{mlp1_forward.1} parent=59 // pred_check
          %p1327 = pneg %p184
        $region62: #{mlp1_forward.1} parent=59 // pred_check_branch
          %1329 = sbr.rel (%p1327) target = $region64
        $region63: #{mlp1_forward.1} parent=59 // pred_region
          %s1330 = smul.u32 2, %s20
          %p1331 = scmp.lt.s32.totalorder %s1330, 3
          %s1332 = scalar_select %p1331, %s1330, 3
          %s1333 = smul.addr %s1332, 8
          %s1334 = scalar_lea.vmem %s6, %s1333
        $region64: #{mlp1_forward.1} parent=59 // pred_fallthru
          _
      $region60: #{mlp1_forward.1} parent=5 // pred_fallthru
        _
    $region6: #{mlp1_forward.1} parent=1 // loop_footer
      %s18 = sadd.s32 1, %s14
    $region7: #{mlp1_forward.1} parent=1 // loop_footer_branch
      %13 = sbr.rel target = $region3
    $region8: #{mlp1_forward.1} parent=1 // loop_exit
      _
    %1335 = vsyncpa [#allocation3], 1
    %s1336 = scalar_lea.sflag [#allocation3], 1
    %1337 = vsyncpa %s1336, 1
    %1338 = vsyncpa [#allocation5], 1

</llo_original>
